<compile_context>
chip_gen: v5e
topology: v5e:2x2
jax: 0.10.0
libtpu: 0.0.40
codegen_flags: <defaults>
</compile_context>

<pallas_src>
import math
import functools

import jax
import jax.numpy as jnp
from jax import lax
from jax.experimental import pallas as pl
from jax.experimental.pallas import tpu as pltpu

HIDDEN = 2048            # fc1 out_features, fixed by the module
_TARGET_FC_ROWS = 512    # batch-fold target for the fc1/fc2 M dimension

# dot_general patterns known to lower cleanly on Mosaic.
_B_CANON = (((2,), (1,)), ((0,), (0,)))   # (b,m,k) x (b,k,n) -> (b,m,n)
_B_RHS_T = (((2,), (2,)), ((0,), (0,)))   # (b,m,k) x (b,n,k) -> (b,m,n)
_RHS_T_2D = (((1,), (1,)), ((), ()))      # (m,k)   x (n,k)   -> (m,n)


def _batched_eye(bb, n, dtype):
    """(bb, n, n) identity from broadcasted iotas (tiny per-step VPU work)."""
    r = lax.broadcasted_iota(jnp.int32, (bb, n, n), 1)
    c = lax.broadcasted_iota(jnp.int32, (bb, n, n), 2)
    return (r == c).astype(dtype)


def _temp_updater_kernel(t0_ref, t1_ref, w1_ref, b1_ref, w2_ref, b2_ref,
                         out_ref, *, inv_factor, mm_dtype):
    # Block shapes:
    #   t0_ref, t1_ref : (bb, C, N)   raw channel-major inputs
    #   w1_ref         : (H, C)  mm_dtype     b1_ref : (1, H)  f32
    #   w2_ref         : (C, H)  mm_dtype     b2_ref : (1, C)  f32
    #   out_ref        : (bb, 2N, C) token-major (lane-dense last dim = C);
    #                    the final permute is done by XLA in the wrapper.
    bb, c, n = t0_ref.shape
    f32 = jnp.float32
    exact = jnp.dtype(mm_dtype) == jnp.dtype(jnp.float32)

    # Hoisted mm_dtype casts of reused operands (each input cast exactly once).
    t0_mm = t0_ref[...].astype(mm_dtype)                      # (bb, C, N)
    t1_mm = t1_ref[...].astype(mm_dtype)                      # (bb, C, N)

    # Token-major copies of t0/t1 via tiny mm_dtype identity matmuls.  This is
    # the only layout flip in the kernel; it always lowers regardless of how
    # small/unaligned (C, N) is, unlike XLU transposes or lhs-transposed dots.
    eye_n = _batched_eye(bb, n, mm_dtype)                     # (bb, N, N)
    t0_t = lax.dot_general(eye_n, t0_mm, _B_RHS_T,
                           preferred_element_type=f32)        # (bb, N, C) == t0_
    t1_t = lax.dot_general(eye_n, t1_mm, _B_RHS_T,
                           preferred_element_type=f32)        # (bb, N, C) == t1_

    # ---- att = softmax((t1_ @ t0) / factor, dim=-1), f32 element-wise ----
    if c <= n:   # fold the scale into the smaller operand
        s_lhs = (t1_t * inv_factor).astype(mm_dtype)
        scores = lax.dot_general(s_lhs, t0_mm, _B_CANON,
                                 preferred_element_type=f32)   # (bb, N, N)
    else:
        scores = lax.dot_general(t1_t.astype(mm_dtype), t0_mm, _B_CANON,
                                 preferred_element_type=f32) * inv_factor
    scores = scores - jnp.max(scores, axis=-1, keepdims=True)
    p = jnp.exp(scores)
    denom = jnp.sum(p, axis=-1, keepdims=True)
    if exact:
        att = p / denom                                        # tight test path
    else:
        att = p * pl.reciprocal(denom, approx=True)            # EUP slot

    # ---- t1_ = att @ t0_ + t1_ ----
    attv = lax.dot_general(att.astype(mm_dtype), t0_t.astype(mm_dtype),
                           _B_CANON, preferred_element_type=f32)  # (bb, N, C)
    t1_new = attv + t1_t

    # ---- t = cat((t0_, t1_), dim=1): kept live, no scratch round trip ----
    t_cat = jnp.concatenate([t0_t, t1_new], axis=1)           # (bb, 2N, C) f32
    t_flat = t_cat.reshape(bb * 2 * n, c)                     # (M, C) f32

    # ---- t = fc2(relu(fc1(t))) + t on the batch-folded slab ----
    h = lax.dot_general(t_flat.astype(mm_dtype), w1_ref[...], _RHS_T_2D,
                        preferred_element_type=f32)            # (M, H) lane-dense
    h = jnp.maximum(h + b1_ref[...], 0.0)
    y = lax.dot_general(h.astype(mm_dtype), w2_ref[...], _RHS_T_2D,
                        preferred_element_type=f32)            # (M, C)
    y = y + b2_ref[...] + t_flat

    # Lane-dense token-major store; the (B,2N,C)->(B,C,2N) permute happens in
    # XLA after the kernel (fusable downstream).
    out_ref[...] = y.reshape(bb, 2 * n, c).astype(out_ref.dtype)


def _pick_block_batch(batch, n_tok):
    """Largest divisor of `batch` such that the folded FC row count bb*2N aims
    at ~_TARGET_FC_ROWS rows, while keeping the grid >= 2 steps when batch >= 2
    so both v7x TensorCores get work via dimension_semantics=("parallel",)."""
    rows_per_batch = 2 * n_tok
    max_bb_rows = max(1, _TARGET_FC_ROWS // rows_per_batch)
    max_bb_grid = batch if batch < 2 else max(1, batch // 2)
    cap = max(1, min(batch, max_bb_rows, max_bb_grid))
    bb = 1
    for d in range(1, batch + 1):
        if batch % d == 0 and d <= cap:
            bb = d
    return bb


def temp_updater_forward(t0, t1, w1, b1, w2, b2, factor, *,
                         mm_dtype=jnp.bfloat16, block_batch=None):
    """t0, t1: (B, C, N) f32; w1: (H, C); b1: (H,); w2: (C, H); b2: (C,).
    Returns (B, C, 2N) f32 with the exact TempUpdater.forward semantics."""
    B, C, N = t0.shape
    H = w1.shape[0]
    bb = _pick_block_batch(B, N) if block_batch is None else block_batch
    assert B % bb == 0, "block_batch must divide the batch"

    w1m = w1.astype(mm_dtype)
    w2m = w2.astype(mm_dtype)
    b1_2d = b1.reshape(1, H).astype(jnp.float32)
    b2_2d = b2.reshape(1, C).astype(jnp.float32)

    kernel = functools.partial(_temp_updater_kernel,
                               inv_factor=float(1.0 / factor),
                               mm_dtype=mm_dtype)

    out_tm = pl.pallas_call(
        kernel,
        out_shape=jax.ShapeDtypeStruct((B, 2 * N, C), t0.dtype),
        grid_spec=pltpu.PrefetchScalarGridSpec(
            num_scalar_prefetch=0,
            grid=(B // bb,),                                   # batch-group axis
            in_specs=[
                pl.BlockSpec((bb, C, N), lambda i: (i, 0, 0)),  # t0 (raw layout)
                pl.BlockSpec((bb, C, N), lambda i: (i, 0, 0)),  # t1 (raw layout)
                pl.BlockSpec((H, C), lambda i: (0, 0)),         # fc1.weight
                pl.BlockSpec((1, H), lambda i: (0, 0)),         # fc1.bias
                pl.BlockSpec((C, H), lambda i: (0, 0)),         # fc2.weight
                pl.BlockSpec((1, C), lambda i: (0, 0)),         # fc2.bias
            ],
            out_specs=pl.BlockSpec((bb, 2 * N, C), lambda i: (i, 0, 0)),
        ),
        compiler_params=pltpu.CompilerParams(
            dimension_semantics=("parallel",),     # shard batch groups (v7x)
            vmem_limit_bytes=48 * 1024 * 1024,     # headroom under v7x 64 MiB
        ),
    )(t0, t1, w1m, b1_2d, w2m, b2_2d)

    # Final permute(0,2,1) done by XLA (kernel stores the lane-dense slab).
    return jnp.transpose(out_tm, (0, 2, 1))


def temp_updater_reference(t0, t1, w1, b1, w2, b2, factor):
    """Pure-JAX f32 reference mirroring the torch module."""
    t0_ = jnp.transpose(t0, (0, 2, 1))
    t1_ = jnp.transpose(t1, (0, 2, 1))
    att = jax.nn.softmax(jnp.einsum('bnc,bcm->bnm', t1_, t0) / factor, axis=-1)
    t1_ = jnp.einsum('bnm,bmc->bnc', att, t0_) + t1_
    t = jnp.concatenate([t0_, t1_], axis=1)
    h = jnp.maximum(jnp.einsum('bnc,hc->bnh', t, w1) + b1, 0.0)
    t = jnp.einsum('bnh,ch->bnc', h, w2) + b2 + t
    return jnp.transpose(t, (0, 2, 1))


if __name__ == "__main__":
    B, C, N = 4, 32, 8          # batch, in_channels, tokens (small test shapes)
    factor = 8.0 if math.sqrt(C) > 10.0 else math.sqrt(C)

    key = jax.random.PRNGKey(0)
    k_t0, k_t1, k_w1, k_b1, k_w2, k_b2 = jax.random.split(key, 6)

    t0 = jax.random.normal(k_t0, (B, C, N), dtype=jnp.float32)
    t1 = jax.random.normal(k_t1, (B, C, N), dtype=jnp.float32)

    # Weights: torch.nn.init.normal_(std=0.01); biases: default Linear uniform init.
    w1 = 0.01 * jax.random.normal(k_w1, (HIDDEN, C), dtype=jnp.float32)
    b1 = jax.random.uniform(k_b1, (HIDDEN,), jnp.float32,
                            -1.0 / math.sqrt(C), 1.0 / math.sqrt(C))
    w2 = 0.01 * jax.random.normal(k_w2, (C, HIDDEN), dtype=jnp.float32)
    b2 = jax.random.uniform(k_b2, (C,), jnp.float32,
                            -1.0 / math.sqrt(HIDDEN), 1.0 / math.sqrt(HIDDEN))

    ref = temp_updater_reference(t0, t1, w1, b1, w2, b2, factor)

    # Default path: bf16 MXU operands, bb=2 -> grid=(2,) (keeps >=2 grid steps).
    out_bf16 = jax.block_until_ready(
        temp_updater_forward(t0, t1, w1, b1, w2, b2, factor))
    assert out_bf16.shape == (B, C, 2 * N)
    assert jnp.allclose(out_bf16, ref, atol=5e-2, rtol=5e-2), \
        "bf16 kernel mismatch vs JAX reference"

    # f32 matmul path with bb=1 (grid=(4,)): tighter numerical check (exact
    # softmax division) and exercises the multi-step software pipeline.
    out_f32 = jax.block_until_ready(
        temp_updater_forward(t0, t1, w1, b1, w2, b2, factor,
                             mm_dtype=jnp.float32, block_batch=1))
    assert jnp.allclose(out_f32, ref, atol=1e-2, rtol=1e-2), \
        "f32 kernel mismatch vs JAX reference"

    print("KERNEL_OK")
</pallas_src>

<mosaic_0001>
module attributes {stable_mosaic.version = 11 : i64} {
  func.func @_temp_updater_kernel(%arg0: i32, %arg1: memref<2x32x8xf32, #tpu.memory_space<vmem>>, %arg2: memref<2x32x8xf32, #tpu.memory_space<vmem>>, %arg3: memref<2048x32xbf16, #tpu.memory_space<vmem>>, %arg4: memref<1x2048xf32, #tpu.memory_space<vmem>>, %arg5: memref<32x2048xbf16, #tpu.memory_space<vmem>>, %arg6: memref<1x32xf32, #tpu.memory_space<vmem>>, %arg7: memref<2x16x32xf32, #tpu.memory_space<vmem>>) attributes {dimension_semantics = [#tpu.dimension_semantics<parallel>], iteration_bounds = array<i64: 2>, scalar_prefetch = 0 : i64, scratch_operands = 0 : i64, tpu.core_type = #tpu.core_type<tc>, window_params = [{transform_indices = @transform_0, window_bounds = array<i64: 2, 32, 8>}, {transform_indices = @transform_1, window_bounds = array<i64: 2, 32, 8>}, {pipeline_mode = #tpu.pipeline_mode<synchronous>, transform_indices = @transform_2, window_bounds = array<i64: 2048, 32>}, {pipeline_mode = #tpu.pipeline_mode<synchronous>, transform_indices = @transform_3, window_bounds = array<i64: 1, 2048>}, {pipeline_mode = #tpu.pipeline_mode<synchronous>, transform_indices = @transform_4, window_bounds = array<i64: 32, 2048>}, {pipeline_mode = #tpu.pipeline_mode<synchronous>, transform_indices = @transform_5, window_bounds = array<i64: 1, 32>}, {transform_indices = @transform_6, window_bounds = array<i64: 2, 16, 32>}]} {
    %c0 = arith.constant 0 : index
    %c0_0 = arith.constant 0 : index
    %c0_1 = arith.constant 0 : index
    %0 = vector.load %arg1[%c0, %c0_0, %c0_1] : memref<2x32x8xf32, #tpu.memory_space<vmem>>, vector<2x32x8xf32>
    %1 = arith.truncf %0 : vector<2x32x8xf32> to vector<2x32x8xbf16>
    %c0_2 = arith.constant 0 : index
    %c0_3 = arith.constant 0 : index
    %c0_4 = arith.constant 0 : index
    %2 = vector.load %arg2[%c0_2, %c0_3, %c0_4] : memref<2x32x8xf32, #tpu.memory_space<vmem>>, vector<2x32x8xf32>
    %3 = arith.truncf %2 : vector<2x32x8xf32> to vector<2x32x8xbf16>
    %4 = tpu.iota {dimensions = array<i32: 1>} : vector<2x8x8xi32>
    %5 = tpu.iota {dimensions = array<i32: 2>} : vector<2x8x8xi32>
    %6 = arith.cmpi eq, %4, %5 : vector<2x8x8xi32>
    %7 = arith.extui %6 : vector<2x8x8xi1> to vector<2x8x8xi32>
    %8 = arith.sitofp %7 : vector<2x8x8xi32> to vector<2x8x8xf32>
    %9 = arith.truncf %8 : vector<2x8x8xf32> to vector<2x8x8xbf16>
    %cst = arith.constant dense<0.000000e+00> : vector<2x8x32xf32>
    %10 = tpu.matmul %9, %1, %cst {dimension_numbers = #tpu.dot_dimension_numbers<[2], [2], [1], [1], [0, 0, 0, 1, 1, 1], [0], [0]>} : vector<2x8x8xbf16>, vector<2x32x8xbf16>, vector<2x8x32xf32> -> vector<2x8x32xf32>
    %cst_5 = arith.constant dense<0.000000e+00> : vector<2x8x32xf32>
    %11 = tpu.matmul %9, %3, %cst_5 {dimension_numbers = #tpu.dot_dimension_numbers<[2], [2], [1], [1], [0, 0, 0, 1, 1, 1], [0], [0]>} : vector<2x8x8xbf16>, vector<2x32x8xbf16>, vector<2x8x32xf32> -> vector<2x8x32xf32>
    %12 = arith.truncf %11 : vector<2x8x32xf32> to vector<2x8x32xbf16>
    %cst_6 = arith.constant dense<0.000000e+00> : vector<2x8x8xf32>
    %13 = tpu.matmul %12, %1, %cst_6 {dimension_numbers = #tpu.dot_dimension_numbers<[2], [1], [1], [2], [0, 0, 0, 1, 1, 2], [0], [0]>} : vector<2x8x32xbf16>, vector<2x32x8xbf16>, vector<2x8x8xf32> -> vector<2x8x8xf32>
    %cst_7 = arith.constant 0.176776692 : f32
    %14 = vector.broadcast %cst_7 : f32 to vector<2x8x8xf32>
    %15 = arith.mulf %13, %14 : vector<2x8x8xf32>
    %cst_8 = arith.constant dense<0xFF800000> : vector<2x8xf32>
    %16 = vector.multi_reduction <maximumf>, %15, %cst_8 [2] : vector<2x8x8xf32> to vector<2x8xf32>
    %17 = vector.shape_cast %16 : vector<2x8xf32> to vector<2x8x1xf32>
    %18 = vector.broadcast %17 : vector<2x8x1xf32> to vector<2x8x8xf32>
    %19 = arith.subf %15, %18 : vector<2x8x8xf32>
    %20 = math.exp %19 : vector<2x8x8xf32>
    %cst_9 = arith.constant dense<0.000000e+00> : vector<2x8xf32>
    %21 = vector.multi_reduction <add>, %20, %cst_9 [2] : vector<2x8x8xf32> to vector<2x8xf32>
    %22 = vector.shape_cast %21 : vector<2x8xf32> to vector<2x8x1xf32>
    %23 = tpu.reciprocal %22 {approx = true} : vector<2x8x1xf32> -> vector<2x8x1xf32>
    %24 = vector.broadcast %23 : vector<2x8x1xf32> to vector<2x8x8xf32>
    %25 = arith.mulf %20, %24 : vector<2x8x8xf32>
    %26 = arith.truncf %25 : vector<2x8x8xf32> to vector<2x8x8xbf16>
    %27 = arith.truncf %10 : vector<2x8x32xf32> to vector<2x8x32xbf16>
    %cst_10 = arith.constant dense<0.000000e+00> : vector<2x8x32xf32>
    %28 = tpu.matmul %26, %27, %cst_10 {dimension_numbers = #tpu.dot_dimension_numbers<[2], [1], [1], [2], [0, 0, 0, 1, 1, 2], [0], [0]>} : vector<2x8x8xbf16>, vector<2x8x32xbf16>, vector<2x8x32xf32> -> vector<2x8x32xf32>
    %29 = arith.addf %28, %11 : vector<2x8x32xf32>
    %30 = tpu.concatenate %10, %29 in 1 : vector<2x8x32xf32>, vector<2x8x32xf32> -> vector<2x16x32xf32>
    %31 = vector.shape_cast %30 : vector<2x16x32xf32> to vector<32x32xf32>
    %32 = arith.truncf %31 : vector<32x32xf32> to vector<32x32xbf16>
    %c0_11 = arith.constant 0 : index
    %c0_12 = arith.constant 0 : index
    %33 = vector.load %arg3[%c0_11, %c0_12] : memref<2048x32xbf16, #tpu.memory_space<vmem>>, vector<2048x32xbf16>
    %cst_13 = arith.constant dense<0.000000e+00> : vector<32x2048xf32>
    %34 = tpu.matmul %32, %33, %cst_13 {dimension_numbers = #tpu.dot_dimension_numbers<[1], [1], [0], [0], [0, 0, 1, 0], [], []>} : vector<32x32xbf16>, vector<2048x32xbf16>, vector<32x2048xf32> -> vector<32x2048xf32>
    %c0_14 = arith.constant 0 : index
    %c0_15 = arith.constant 0 : index
    %35 = vector.load %arg4[%c0_14, %c0_15] : memref<1x2048xf32, #tpu.memory_space<vmem>>, vector<1x2048xf32>
    %36 = vector.broadcast %35 : vector<1x2048xf32> to vector<32x2048xf32>
    %37 = arith.addf %34, %36 : vector<32x2048xf32>
    %cst_16 = arith.constant 0.000000e+00 : f32
    %38 = vector.broadcast %cst_16 : f32 to vector<32x2048xf32>
    %39 = arith.maximumf %37, %38 : vector<32x2048xf32>
    %40 = arith.truncf %39 : vector<32x2048xf32> to vector<32x2048xbf16>
    %c0_17 = arith.constant 0 : index
    %c0_18 = arith.constant 0 : index
    %41 = vector.load %arg5[%c0_17, %c0_18] : memref<32x2048xbf16, #tpu.memory_space<vmem>>, vector<32x2048xbf16>
    %cst_19 = arith.constant dense<0.000000e+00> : vector<32x32xf32>
    %42 = tpu.matmul %40, %41, %cst_19 {dimension_numbers = #tpu.dot_dimension_numbers<[1], [1], [0], [0], [0, 0, 1, 0], [], []>} : vector<32x2048xbf16>, vector<32x2048xbf16>, vector<32x32xf32> -> vector<32x32xf32>
    %c0_20 = arith.constant 0 : index
    %c0_21 = arith.constant 0 : index
    %43 = vector.load %arg6[%c0_20, %c0_21] : memref<1x32xf32, #tpu.memory_space<vmem>>, vector<1x32xf32>
    %44 = vector.broadcast %43 : vector<1x32xf32> to vector<32x32xf32>
    %45 = arith.addf %42, %44 : vector<32x32xf32>
    %46 = arith.addf %45, %31 : vector<32x32xf32>
    %47 = vector.shape_cast %46 : vector<32x32xf32> to vector<2x16x32xf32>
    %c0_22 = arith.constant 0 : index
    %c0_23 = arith.constant 0 : index
    %c0_24 = arith.constant 0 : index
    %48 = vector.load %arg7[%c0_22, %c0_23, %c0_24] : memref<2x16x32xf32, #tpu.memory_space<vmem>>, vector<2x16x32xf32>
    tpu.vector_store %arg7[%c0_22, %c0_23, %c0_24], %47 {strides = array<i32>} : memref<2x16x32xf32, #tpu.memory_space<vmem>>, vector<2x16x32xf32>,
    return
  }
  func.func @transform_0(%arg0: i32) -> (i32, i32, i32) {
    %c0_i32 = arith.constant 0 : i32
    %c0_i32_0 = arith.constant 0 : i32
    %c0_i32_1 = arith.constant 0 : i32
    return %arg0, %c0_i32, %c0_i32_0 : i32, i32, i32
  }
  func.func @transform_1(%arg0: i32) -> (i32, i32, i32) {
    %c0_i32 = arith.constant 0 : i32
    %c0_i32_0 = arith.constant 0 : i32
    %c0_i32_1 = arith.constant 0 : i32
    return %arg0, %c0_i32, %c0_i32_0 : i32, i32, i32
  }
  func.func @transform_2(%arg0: i32) -> (i32, i32) {
    %c0_i32 = arith.constant 0 : i32
    %c0_i32_0 = arith.constant 0 : i32
    %c0_i32_1 = arith.constant 0 : i32
    return %c0_i32, %c0_i32_0 : i32, i32
  }
  func.func @transform_3(%arg0: i32) -> (i32, i32) {
    %c0_i32 = arith.constant 0 : i32
    %c0_i32_0 = arith.constant 0 : i32
    %c0_i32_1 = arith.constant 0 : i32
    return %c0_i32, %c0_i32_0 : i32, i32
  }
  func.func @transform_4(%arg0: i32) -> (i32, i32) {
    %c0_i32 = arith.constant 0 : i32
    %c0_i32_0 = arith.constant 0 : i32
    %c0_i32_1 = arith.constant 0 : i32
    return %c0_i32, %c0_i32_0 : i32, i32
  }
  func.func @transform_5(%arg0: i32) -> (i32, i32) {
    %c0_i32 = arith.constant 0 : i32
    %c0_i32_0 = arith.constant 0 : i32
    %c0_i32_1 = arith.constant 0 : i32
    return %c0_i32, %c0_i32_0 : i32, i32
  }
  func.func @transform_6(%arg0: i32) -> (i32, i32, i32) {
    %c0_i32 = arith.constant 0 : i32
    %c0_i32_0 = arith.constant 0 : i32
    %c0_i32_1 = arith.constant 0 : i32
    return %arg0, %c0_i32, %c0_i32_0 : i32, i32, i32
  }
}

</mosaic_0001>

<llo_original>
// kernel: tpu_custom_call.1
$region0: #{tpu_custom_call.1}
  #allocation0 [shape = 'u32[]', space=smem, size = 0x4, offset = 0x4, fixed_abs, tag = 'smem constant byte address 0x4 - core index']
  #allocation1 [shape = 'u32[72,128]{1,0:T(1,128)}', space=vmem, size = 0x9000, scoped, tag = 'internal scratch']
  %s0 = inlined_call_operand.vmem [shape: f32[4,32,8], index: 0, kind: input, shape index: {}]
  %s1 = inlined_call_operand.vmem [shape: f32[4,32,8], index: 1, kind: input, shape index: {}]
  %s2 = inlined_call_operand.vmem [shape: bf16[2048,32], index: 2, kind: input, shape index: {}]
  %s3 = inlined_call_operand.vmem [shape: f32[1,2048], index: 3, kind: input, shape index: {}]
  %s4 = inlined_call_operand.vmem [shape: bf16[32,2048], index: 4, kind: input, shape index: {}]
  %s5 = inlined_call_operand.vmem [shape: f32[1,32], index: 5, kind: input, shape index: {}]
  %s6 = inlined_call_operand.hbm [shape: f32[4,16,32], index: 6, kind: output, shape index: {}]
  %s7 = sld [smem:[#allocation0]]
  $region57: #{tpu_custom_call.1} parent=0
    _
  %s9 = ssub.s32 1, %s7
  %s10 = scalar_select 0, %s9, %s7
  $region1: #{tpu_custom_call.1} parent=0
    #allocation2 [shape = 'u8[32768]{0}', space=vmem, size = 0x8000, scoped, tag = 'output window, operand 0']
    #allocation3 [shape = 's32[2]{0}', space=sflag, size = 0x8, scoped, tag = 'scoped memory for tpu_custom_call.1']
    %11 = vsyncpa [#allocation3], 0
    %s12 = scalar_lea.sflag [#allocation3], 1
    %13 = vsyncpa %s12, 0
    loop: start=0, step=1, limit=4
    $region2: #{tpu_custom_call.1} parent=1 // loop_pre_header
      _
    $region3: #{tpu_custom_call.1} parent=1 // loop_header
      %s15 = sphi 0, %s19
      %p16 = scmp.ge.s32.totalorder %s15, 4
      %s25 = sphi 0, %s27
      %s28 = sphi 0, %s25
      %s29 = sphi 0, %s28
      %s45 = sphi 0, %s29
      %s51 = sphi 0, %s53
      %s54 = sphi 0, %s51
      %s55 = sphi 0, %s54
      %s71 = sphi 0, %s55
      %s75 = sphi 0, %s75
      %s77 = sphi 0, %s75
      %s78 = sphi 0, %s77
      %s92 = sphi 0, %s78
      %s96 = sphi 0, %s96
      %s98 = sphi 0, %s96
      %s99 = sphi 0, %s98
      %s113 = sphi 0, %s99
      %s117 = sphi 0, %s117
      %s119 = sphi 0, %s117
      %s120 = sphi 0, %s119
      %s134 = sphi 0, %s120
      %s138 = sphi 0, %s138
      %s140 = sphi 0, %s138
      %s141 = sphi 0, %s140
      %s155 = sphi 0, %s141
      %s161 = sphi 0, %s163
      %s164 = sphi 0, %s161
      %s165 = sphi 0, %s164
      %s181 = sphi 0, %s165
    $region4: #{tpu_custom_call.1} parent=1 // loop_header_branch
      %18 = sbr.rel (%p16) target = $region8
    $region5: #{tpu_custom_call.1} parent=1 // loop_body
      %s20 = ssub.s32 %s15, 1
      %s21 = ssub.s32 %s15, 2
      %s22 = sadd.s32 %s15, 1
      %s23 = ssub.s32 %s15, %s22
      %p24 = scmp.eq.s32.totalorder %s23, 0
      %s26 = sadd.s32 %s25, 1
      %s27 = scalar_select %p24, %s25, %s26
      %p30 = pneg %p24
      %p31 = scmp.eq.s32.totalorder %s15, 1
      %p32 = por %p30, %p31
      %p33 = scmp.ne.s32.totalorder %s25, %s28
      %p34 = scmp.eq.s32.totalorder %s15, 0
      %p35 = por %p33, %p34
      %p36 = scmp.ne.s32.totalorder %s25, %s28
      %p37 = scmp.eq.s32.totalorder %s20, 1
      %p38 = por %p36, %p37
      %p39 = scmp.ne.s32.totalorder %s28, %s29
      %p40 = scmp.eq.s32.totalorder %s20, 0
      %p41 = por %p39, %p40
      %p42 = scmp.ne.s32.totalorder %s28, %s29
      %p43 = scmp.eq.s32.totalorder %s21, 1
      %p44 = por %p42, %p43
      %p46 = scmp.ne.s32.totalorder %s29, %s45
      %p47 = scmp.eq.s32.totalorder %s21, 0
      %p48 = por %p46, %p47
      %s49 = ssub.s32 %s15, %s22
      %p50 = scmp.eq.s32.totalorder %s49, 0
      %s52 = sadd.s32 %s51, 1
      %s53 = scalar_select %p50, %s51, %s52
      %p56 = pneg %p50
      %p57 = scmp.eq.s32.totalorder %s15, 1
      %p58 = por %p56, %p57
      %p59 = scmp.ne.s32.totalorder %s51, %s54
      %p60 = scmp.eq.s32.totalorder %s15, 0
      %p61 = por %p59, %p60
      %p62 = scmp.ne.s32.totalorder %s51, %s54
      %p63 = scmp.eq.s32.totalorder %s20, 1
      %p64 = por %p62, %p63
      %p65 = scmp.ne.s32.totalorder %s54, %s55
      %p66 = scmp.eq.s32.totalorder %s20, 0
      %p67 = por %p65, %p66
      %p68 = scmp.ne.s32.totalorder %s54, %s55
      %p69 = scmp.eq.s32.totalorder %s21, 1
      %p70 = por %p68, %p69
      %p72 = scmp.ne.s32.totalorder %s55, %s71
      %p73 = scmp.eq.s32.totalorder %s21, 0
      %p74 = por %p72, %p73
      %s76 = sadd.s32 %s75, 1
      %p79 = scmp.eq.s32.totalorder %s15, 1
      %p80 = scmp.ne.s32.totalorder %s75, %s77
      %p81 = scmp.eq.s32.totalorder %s15, 0
      %p82 = por %p80, %p81
      %p83 = scmp.ne.s32.totalorder %s75, %s77
      %p84 = scmp.eq.s32.totalorder %s20, 1
      %p85 = por %p83, %p84
      %p86 = scmp.ne.s32.totalorder %s77, %s78
      %p87 = scmp.eq.s32.totalorder %s20, 0
      %p88 = por %p86, %p87
      %p89 = scmp.ne.s32.totalorder %s77, %s78
      %p90 = scmp.eq.s32.totalorder %s21, 1
      %p91 = por %p89, %p90
      %p93 = scmp.ne.s32.totalorder %s78, %s92
      %p94 = scmp.eq.s32.totalorder %s21, 0
      %p95 = por %p93, %p94
      %s97 = sadd.s32 %s96, 1
      %p100 = scmp.eq.s32.totalorder %s15, 1
      %p101 = scmp.ne.s32.totalorder %s96, %s98
      %p102 = scmp.eq.s32.totalorder %s15, 0
      %p103 = por %p101, %p102
      %p104 = scmp.ne.s32.totalorder %s96, %s98
      %p105 = scmp.eq.s32.totalorder %s20, 1
      %p106 = por %p104, %p105
      %p107 = scmp.ne.s32.totalorder %s98, %s99
      %p108 = scmp.eq.s32.totalorder %s20, 0
      %p109 = por %p107, %p108
      %p110 = scmp.ne.s32.totalorder %s98, %s99
      %p111 = scmp.eq.s32.totalorder %s21, 1
      %p112 = por %p110, %p111
      %p114 = scmp.ne.s32.totalorder %s99, %s113
      %p115 = scmp.eq.s32.totalorder %s21, 0
      %p116 = por %p114, %p115
      %s118 = sadd.s32 %s117, 1
      %p121 = scmp.eq.s32.totalorder %s15, 1
      %p122 = scmp.ne.s32.totalorder %s117, %s119
      %p123 = scmp.eq.s32.totalorder %s15, 0
      %p124 = por %p122, %p123
      %p125 = scmp.ne.s32.totalorder %s117, %s119
      %p126 = scmp.eq.s32.totalorder %s20, 1
      %p127 = por %p125, %p126
      %p128 = scmp.ne.s32.totalorder %s119, %s120
      %p129 = scmp.eq.s32.totalorder %s20, 0
      %p130 = por %p128, %p129
      %p131 = scmp.ne.s32.totalorder %s119, %s120
      %p132 = scmp.eq.s32.totalorder %s21, 1
      %p133 = por %p131, %p132
      %p135 = scmp.ne.s32.totalorder %s120, %s134
      %p136 = scmp.eq.s32.totalorder %s21, 0
      %p137 = por %p135, %p136
      %s139 = sadd.s32 %s138, 1
      %p142 = scmp.eq.s32.totalorder %s15, 1
      %p143 = scmp.ne.s32.totalorder %s138, %s140
      %p144 = scmp.eq.s32.totalorder %s15, 0
      %p145 = por %p143, %p144
      %p146 = scmp.ne.s32.totalorder %s138, %s140
      %p147 = scmp.eq.s32.totalorder %s20, 1
      %p148 = por %p146, %p147
      %p149 = scmp.ne.s32.totalorder %s140, %s141
      %p150 = scmp.eq.s32.totalorder %s20, 0
      %p151 = por %p149, %p150
      %p152 = scmp.ne.s32.totalorder %s140, %s141
      %p153 = scmp.eq.s32.totalorder %s21, 1
      %p154 = por %p152, %p153
      %p156 = scmp.ne.s32.totalorder %s141, %s155
      %p157 = scmp.eq.s32.totalorder %s21, 0
      %p158 = por %p156, %p157
      %s159 = ssub.s32 %s15, %s22
      %p160 = scmp.eq.s32.totalorder %s159, 0
      %s162 = sadd.s32 %s161, 1
      %s163 = scalar_select %p160, %s161, %s162
      %p166 = pneg %p160
      %p167 = scmp.eq.s32.totalorder %s15, 1
      %p168 = por %p166, %p167
      %p169 = scmp.ne.s32.totalorder %s161, %s164
      %p170 = scmp.eq.s32.totalorder %s15, 0
      %p171 = por %p169, %p170
      %p172 = scmp.ne.s32.totalorder %s161, %s164
      %p173 = scmp.eq.s32.totalorder %s20, 1
      %p174 = por %p172, %p173
      %p175 = scmp.ne.s32.totalorder %s164, %s165
      %p176 = scmp.eq.s32.totalorder %s20, 0
      %p177 = por %p175, %p176
      %p178 = scmp.ne.s32.totalorder %s164, %s165
      %p179 = scmp.eq.s32.totalorder %s21, 1
      %p180 = por %p178, %p179
      %p182 = scmp.ne.s32.totalorder %s165, %s181
      %p183 = scmp.eq.s32.totalorder %s21, 0
      %p184 = por %p182, %p183
      %p185 = scmp.le.s32.totalorder 1, %s15
      %p186 = scmp.lt.s32.totalorder %s15, 3
      %p187 = pnand %p185, %p186
      %p188 = pneg %p187
      // Predicated region
      $region9: #{tpu_custom_call.1} parent=5 // pred_check
        _
      $region10: #{tpu_custom_call.1} parent=5 // pred_check_branch
        %190 = sbr.rel (%p187) target = $region12
      $region11: #{tpu_custom_call.1} parent=5 // pred_region
        %s191 = ssub.s32 %s15, 1
        // Predicated region
        $region13: #{tpu_custom_call.1} parent=11 // pred_check
          %p192 = pneg %p88
        $region14: #{tpu_custom_call.1} parent=11 // pred_check_branch
          %194 = sbr.rel (%p192) target = $region16
        $region15: #{tpu_custom_call.1} parent=11 // pred_region
          _
        $region16: #{tpu_custom_call.1} parent=11 // pred_fallthru
          _
        // Predicated region
        $region17: #{tpu_custom_call.1} parent=11 // pred_check
          %p195 = pneg %p109
        $region18: #{tpu_custom_call.1} parent=11 // pred_check_branch
          %197 = sbr.rel (%p195) target = $region20
        $region19: #{tpu_custom_call.1} parent=11 // pred_region
          _
        $region20: #{tpu_custom_call.1} parent=11 // pred_fallthru
          _
        // Predicated region
        $region21: #{tpu_custom_call.1} parent=11 // pred_check
          %p198 = pneg %p130
        $region22: #{tpu_custom_call.1} parent=11 // pred_check_branch
          %200 = sbr.rel (%p198) target = $region24
        $region23: #{tpu_custom_call.1} parent=11 // pred_region
          _
        $region24: #{tpu_custom_call.1} parent=11 // pred_fallthru
          _
        // Predicated region
        $region25: #{tpu_custom_call.1} parent=11 // pred_check
          %p201 = pneg %p151
        $region26: #{tpu_custom_call.1} parent=11 // pred_check_branch
          %203 = sbr.rel (%p201) target = $region28
        $region27: #{tpu_custom_call.1} parent=11 // pred_region
          _
        $region28: #{tpu_custom_call.1} parent=11 // pred_fallthru
          _
      $region12: #{tpu_custom_call.1} parent=5 // pred_fallthru
        _
      %p204 = scmp.lt.s32.totalorder %s15, 2
      // Predicated region
      $region29: #{tpu_custom_call.1} parent=5 // pred_check
        %p205 = pneg %p204
      $region30: #{tpu_custom_call.1} parent=5 // pred_check_branch
        %207 = sbr.rel (%p205) target = $region32
      $region31: #{tpu_custom_call.1} parent=5 // pred_region
        // Predicated region
        $region33: #{tpu_custom_call.1} parent=31 // pred_check
          %p208 = pneg %p35
        $region34: #{tpu_custom_call.1} parent=31 // pred_check_branch
          %210 = sbr.rel (%p208) target = $region36
        $region35: #{tpu_custom_call.1} parent=31 // pred_region
          %s211 = smul.u32 2, %s15
          %p212 = scmp.lt.s32.totalorder %s211, 3
          %s213 = scalar_select %p212, %s211, 3
          %s214 = smul.addr %s213, 4
          %s215 = smul.addr %s214, 8
          %s216 = scalar_lea.vmem %s0, %s215
          %s217 = smul.u32 2, %s15
        $region36: #{tpu_custom_call.1} parent=31 // pred_fallthru
          _
        // Predicated region
        $region37: #{tpu_custom_call.1} parent=31 // pred_check
          %p218 = pneg %p61
        $region38: #{tpu_custom_call.1} parent=31 // pred_check_branch
          %220 = sbr.rel (%p218) target = $region40
        $region39: #{tpu_custom_call.1} parent=31 // pred_region
          %s221 = smul.u32 2, %s15
          %p222 = scmp.lt.s32.totalorder %s221, 3
          %s223 = scalar_select %p222, %s221, 3
          %s224 = smul.addr %s223, 4
          %s225 = smul.addr %s224, 8
          %s226 = scalar_lea.vmem %s1, %s225
          %s227 = smul.u32 2, %s15
        $region40: #{tpu_custom_call.1} parent=31 // pred_fallthru
          _
      $region32: #{tpu_custom_call.1} parent=5 // pred_fallthru
        _
      %p228 = scmp.le.s32.totalorder 1, %s15
      %p229 = scmp.lt.s32.totalorder %s15, 3
      %p230 = pnand %p228, %p229
      %p231 = pneg %p230
      // Predicated region
      $region41: #{tpu_custom_call.1} parent=5 // pred_check
        _
      $region42: #{tpu_custom_call.1} parent=5 // pred_check_branch
        %233 = sbr.rel (%p230) target = $region44
      $region43: #{tpu_custom_call.1} parent=5 // pred_region
        %s234 = ssub.s32 %s15, 1
        %s235 = smul.u32 2, %s20
        %p236 = scmp.lt.s32.totalorder %s235, 3
        %s237 = scalar_select %p236, %s235, 3
        %s238 = smul.addr %s237, 4
        %s239 = smul.addr %s238, 8
        %s240 = scalar_lea.vmem %s0, %s239
        %p241 = pneg %p41
        %p242 = pneg %p38
        %s243 = smul.u32 2, %s20
        %p244 = scmp.lt.s32.totalorder %s243, 3
        %s245 = scalar_select %p244, %s243, 3
        %s246 = smul.addr %s245, 4
        %s247 = smul.addr %s246, 8
        %s248 = scalar_lea.vmem %s1, %s247
        %p249 = pneg %p67
        %p250 = pneg %p64
        %p251 = pneg %p88
        %p252 = pneg %p85
        %p253 = pneg %p109
        %p254 = pneg %p106
        %p255 = pneg %p130
        %p256 = pneg %p127
        %p257 = pneg %p151
        %p258 = pneg %p148
        %p259 = pneg %p177
        %p260 = pneg %p174
        %s261 = sand.u32 %s164, 1
        %s262 = scalar_lea.sflag [#allocation3], %s261
        %s263 = sand.u32 %s164, 1
        %s264 = smul.addr %s263, 32
        %s265 = scalar_lea.vmem [#allocation2], %s264
        %s266 = smul.u32 2, %s20
        %p267 = scmp.lt.s32.totalorder %s266, 3
        %s268 = scalar_select %p267, %s266, 3
        %s269 = smul.addr %s268, 4
        %s270 = smul.addr %s269, 8
        %s271 = scalar_lea.vmem %s0, %s270
        %s272 = smul.u32 2, %s20
        %s273 = smul.u32 2, %s20
        %p274 = scmp.lt.s32.totalorder %s273, 3
        %s275 = scalar_select %p274, %s273, 3
        %s276 = smul.addr %s275, 4
        %s277 = smul.addr %s276, 8
        %s278 = scalar_lea.vmem %s1, %s277
        %s279 = smul.u32 2, %s20
        %s280 = smul.u32 2, %s20
        %v282 = vld [vmem:[%s271] sm:$0xff]
        %v283 = vld [vmem:[%s271 + $0x8] sm:$0xff]
        %v284 = vld [vmem:[%s271 + $0x10] sm:$0xff]
        %v285 = vld [vmem:[%s271 + $0x18] sm:$0xff]
        %v286 = vld [vmem:[%s271 + $0x20] sm:$0xff]
        %v287 = vld [vmem:[%s271 + $0x28] sm:$0xff]
        %v288 = vld [vmem:[%s271 + $0x30] sm:$0xff]
        %v289 = vld [vmem:[%s271 + $0x38] sm:$0xff]
        %v290 = vpack.c.bf16 %v282, %v282
        %v291 = vpack.c.bf16 %v283, %v283
        %v292 = vpack.c.bf16 %v284, %v284
        %v293 = vpack.c.bf16 %v285, %v285
        %v294 = vpack.c.bf16 %v286, %v286
        %v295 = vpack.c.bf16 %v287, %v287
        %v296 = vpack.c.bf16 %v288, %v288
        %v297 = vpack.c.bf16 %v289, %v289
        %v298 = vld [vmem:[%s278] sm:$0xff]
        %v299 = vld [vmem:[%s278 + $0x8] sm:$0xff]
        %v300 = vld [vmem:[%s278 + $0x10] sm:$0xff]
        %v301 = vld [vmem:[%s278 + $0x18] sm:$0xff]
        %v302 = vld [vmem:[%s278 + $0x20] sm:$0xff]
        %v303 = vld [vmem:[%s278 + $0x28] sm:$0xff]
        %v304 = vld [vmem:[%s278 + $0x30] sm:$0xff]
        %v305 = vld [vmem:[%s278 + $0x38] sm:$0xff]
        %v306 = vpack.c.bf16 %v298, %v298
        %v307 = vpack.c.bf16 %v299, %v299
        %v308 = vpack.c.bf16 %v300, %v300
        %v309 = vpack.c.bf16 %v301, %v301
        %v310 = vpack.c.bf16 %v302, %v302
        %v311 = vpack.c.bf16 %v303, %v303
        %v312 = vpack.c.bf16 %v304, %v304
        %v313 = vpack.c.bf16 %v305, %v305
        %v314 = vlaneseq
        %v315 = vshrl.u32 %v314, 7
        %v316 = vlaneseq
        %v317 = vand.u32 %v316, 127
        %vm318 = vcmp.eq.s32.totalorder %v315, %v317
        %v319 = vsel %vm318, 1, 0
        %v320 = vcvt.s32.f32 %v319
        %v321 = vpack.c.bf16 %v320, %v320
        %v326 = vunpack.c.l.b16 %v290
        %v327 = vunpack.c.l.b16 %v291
        %v328 = vunpack.c.l.b16 %v292
        %v329 = vunpack.c.l.b16 %v293
        %v330 = vpack.c.b16 %v327, %v326
        %v331 = vpack.c.b16 %v329, %v328
        %vm332 = vcmask 64512
        %v334 = vsel %vm332, %v321, 0
        %v337 = vsel %vm332, %v330, 0
        %v340 = vsel %vm332, %v331, 0
        %342 = vmatpush.bf16.xpose.msra.mxu0 0
        %343 = vmatpush.bf16.xpose.msra.mxu0 0
        %344 = vmatpush.bf16.xpose.msra.mxu0 0
        %345 = vmatpush.bf16.xpose.msra.mxu0 0
        %346 = vmatpush.bf16.xpose.msra.mxu0 0
        %347 = vmatpush.bf16.xpose.msra.mxu0 0
        %348 = vmatpush.bf16.xpose.msra.mxu0 %v340
        %349 = vmatpush.bf16.xpose.msra.mxu0 %v337
        %350 = vmatmul.bf16.gmra.mxu0 %v334
        %v351 = vpop.f32.mrf.mxu0
        %v352 = vadd.f32 0.0, %v351
        %v353 = vpop.f32.mrf.mxu0
        %354 = vdwg.mxu0
        %v359 = vunpack.c.l.b16 %v294
        %v360 = vunpack.c.l.b16 %v295
        %v361 = vunpack.c.l.b16 %v296
        %v362 = vunpack.c.l.b16 %v297
        %v363 = vpack.c.b16 %v360, %v359
        %v364 = vpack.c.b16 %v362, %v361
        %v366 = vsel %vm332, %v363, 0
        %v369 = vsel %vm332, %v364, 0
        %371 = vmatpush.bf16.xpose.msra.mxu0 0
        %372 = vmatpush.bf16.xpose.msra.mxu0 0
        %373 = vmatpush.bf16.xpose.msra.mxu0 0
        %374 = vmatpush.bf16.xpose.msra.mxu0 0
        %375 = vmatpush.bf16.xpose.msra.mxu0 0
        %376 = vmatpush.bf16.xpose.msra.mxu0 0
        %377 = vmatpush.bf16.xpose.msra.mxu0 %v369
        %378 = vmatpush.bf16.xpose.msra.mxu0 %v366
        %379 = vmatmul.bf16.gmra.mxu0 %v334
        %v380 = vpop.f32.mrf.mxu0
        %v381 = vadd.f32 0.0, %v380
        %v382 = vpop.f32.mrf.mxu0
        %383 = vdwg.mxu0
        %v388 = vunpack.c.l.b16 %v306
        %v389 = vunpack.c.l.b16 %v307
        %v390 = vunpack.c.l.b16 %v308
        %v391 = vunpack.c.l.b16 %v309
        %v392 = vpack.c.b16 %v389, %v388
        %v393 = vpack.c.b16 %v391, %v390
        %v395 = vsel %vm332, %v392, 0
        %v398 = vsel %vm332, %v393, 0
        %400 = vmatpush.bf16.xpose.msra.mxu0 0
        %401 = vmatpush.bf16.xpose.msra.mxu0 0
        %402 = vmatpush.bf16.xpose.msra.mxu0 0
        %403 = vmatpush.bf16.xpose.msra.mxu0 0
        %404 = vmatpush.bf16.xpose.msra.mxu0 0
        %405 = vmatpush.bf16.xpose.msra.mxu0 0
        %406 = vmatpush.bf16.xpose.msra.mxu0 %v398
        %407 = vmatpush.bf16.xpose.msra.mxu0 %v395
        %408 = vmatmul.bf16.gmra.mxu0 %v334
        %v409 = vpop.f32.mrf.mxu0
        %v410 = vadd.f32 0.0, %v409
        %v411 = vpop.f32.mrf.mxu0
        %412 = vdwg.mxu0
        %v417 = vunpack.c.l.b16 %v310
        %v418 = vunpack.c.l.b16 %v311
        %v419 = vunpack.c.l.b16 %v312
        %v420 = vunpack.c.l.b16 %v313
        %v421 = vpack.c.b16 %v418, %v417
        %v422 = vpack.c.b16 %v420, %v419
        %v424 = vsel %vm332, %v421, 0
        %v427 = vsel %vm332, %v422, 0
        %429 = vmatpush.bf16.xpose.msra.mxu0 0
        %430 = vmatpush.bf16.xpose.msra.mxu0 0
        %431 = vmatpush.bf16.xpose.msra.mxu0 0
        %432 = vmatpush.bf16.xpose.msra.mxu0 0
        %433 = vmatpush.bf16.xpose.msra.mxu0 0
        %434 = vmatpush.bf16.xpose.msra.mxu0 0
        %435 = vmatpush.bf16.xpose.msra.mxu0 %v427
        %436 = vmatpush.bf16.xpose.msra.mxu0 %v424
        %437 = vmatmul.bf16.gmra.mxu0 %v334
        %v438 = vpop.f32.mrf.mxu0
        %v439 = vadd.f32 0.0, %v438
        %v440 = vpop.f32.mrf.mxu0
        %441 = vdwg.mxu0
        %v442 = vpack.c.bf16 %v410, %v410
        %v443 = vpack.c.bf16 %v439, %v439
        %vm446 = vcmask 261120
        %v448 = vsel %vm446, %v442, 0
        %450 = vmatpush.bf16.msra.mxu0 0
        %451 = vmatpush.bf16.msra.mxu0 0
        %452 = vmatpush.bf16.msra.mxu0 0
        %453 = vmatpush.bf16.msra.mxu0 0
        %454 = vmatpush.bf16.msra.mxu0 0
        %455 = vmatpush.bf16.msra.mxu0 0
        %456 = vmatpush.bf16.msra.mxu0 %v331
        %457 = vmatpush.bf16.msra.mxu0 %v330
        %458 = vmatmul.bf16.gmra.mxu0 %v448
        %v459 = vpop.f32.mrf.mxu0
        %v460 = vadd.f32 0.0, %v459
        %v461 = vpop.f32.mrf.mxu0
        %462 = vdwg.mxu0
        %v466 = vsel %vm446, %v443, 0
        %468 = vmatpush.bf16.msra.mxu0 0
        %469 = vmatpush.bf16.msra.mxu0 0
        %470 = vmatpush.bf16.msra.mxu0 0
        %471 = vmatpush.bf16.msra.mxu0 0
        %472 = vmatpush.bf16.msra.mxu0 0
        %473 = vmatpush.bf16.msra.mxu0 0
        %474 = vmatpush.bf16.msra.mxu0 %v364
        %475 = vmatpush.bf16.msra.mxu0 %v363
        %476 = vmatmul.bf16.gmra.mxu0 %v466
        %v477 = vpop.f32.mrf.mxu0
        %v478 = vadd.f32 0.0, %v477
        %v479 = vpop.f32.mrf.mxu0
        %480 = vdwg.mxu0
        %v481 = vmul.f32 %v460, 0.17677669
        %v482 = vmul.f32 %v478, 0.17677669
        %v483 = vsel %vm332, %v481, -inf
        %484 = vmax.xlane.f32.xlu0 %v483
        %v485 = vpop.xlane.xlu0 %484
        %v486 = vsel %vm332, %v482, -inf
        %487 = vmax.xlane.f32.xlu0 %v486
        %v488 = vpop.xlane.xlu0 %487
        %v489 = vsub.f32 %v481, %v485
        %v490 = vsub.f32 %v482, %v488
        %v491 = vmul.f32 %v489, 1.442695
        %v492 = vpow.pop %v491
        %v493 = vmul.f32 %v490, 1.442695
        %v494 = vpow.pop %v493
        %v495 = vsel %vm332, %v492, 0.0
        %496 = vadd.xlane.f32.xlu0 %v495
        %v497 = vpop.xlane.xlu0 %496
        %v498 = vsel %vm332, %v494, 0.0
        %499 = vadd.xlane.f32.xlu0 %v498
        %v500 = vpop.xlane.xlu0 %499
        %v501 = vrcp.pop %v497
        %v502 = vrcp.pop %v500
        %v503 = vmul.f32 %v492, %v501
        %v504 = vmul.f32 %v494, %v502
        %v505 = vpack.c.bf16 %v503, %v503
        %v506 = vpack.c.bf16 %v504, %v504
        %v507 = vpack.c.bf16 %v352, %v352
        %v508 = vpack.c.bf16 %v381, %v381
        %v510 = vsel %vm332, %v505, 0
        %vm512 = vcmask 1043456
        %v514 = vsel %vm512, %v507, 0
        %516 = vmatpush.bf16.msra.mxu0 0
        %517 = vmatpush.bf16.msra.mxu0 0
        %518 = vmatpush.bf16.msra.mxu0 0
        %519 = vmatpush.bf16.msra.mxu0 0
        %520 = vmatpush.bf16.msra.mxu0 0
        %521 = vmatpush.bf16.msra.mxu0 0
        %522 = vmatpush.bf16.msra.mxu0 0
        %523 = vmatpush.bf16.msra.mxu0 %v514
        %524 = vmatmul.bf16.gmra.mxu0 %v510
        %v525 = vpop.f32.mrf.mxu0
        %v526 = vadd.f32 %v410, %v525
        %v527 = vpop.f32.mrf.mxu0
        %528 = vdwg.mxu0
        %v530 = vsel %vm332, %v506, 0
        %v533 = vsel %vm512, %v508, 0
        %535 = vmatpush.bf16.msra.mxu0 0
        %536 = vmatpush.bf16.msra.mxu0 0
        %537 = vmatpush.bf16.msra.mxu0 0
        %538 = vmatpush.bf16.msra.mxu0 0
        %539 = vmatpush.bf16.msra.mxu0 0
        %540 = vmatpush.bf16.msra.mxu0 0
        %541 = vmatpush.bf16.msra.mxu0 0
        %542 = vmatpush.bf16.msra.mxu0 %v533
        %543 = vmatmul.bf16.gmra.mxu0 %v530
        %v544 = vpop.f32.mrf.mxu0
        %v545 = vadd.f32 %v439, %v544
        %v546 = vpop.f32.mrf.mxu0
        %547 = vdwg.mxu0
        %v548 = vpack.c.bf16 %v526, %v352
        %v549 = vpack.c.bf16 %v545, %v381
        %v550 = vld [vmem:[%s2] sm:$0xf]
        %v551 = vld [vmem:[%s2 + $0x4] sm:$0xf]
        %v552 = vld [vmem:[%s2 + $0x8] sm:$0xf]
        %v553 = vld [vmem:[%s2 + $0xc] sm:$0xf]
        %v554 = vld [vmem:[%s2 + $0x10] sm:$0xf]
        %v555 = vld [vmem:[%s2 + $0x14] sm:$0xf]
        %v556 = vld [vmem:[%s2 + $0x18] sm:$0xf]
        %v557 = vld [vmem:[%s2 + $0x1c] sm:$0xf]
        %v558 = vld [vmem:[%s2 + $0x20] sm:$0xf]
        %v559 = vld [vmem:[%s2 + $0x24] sm:$0xf]
        %v560 = vld [vmem:[%s2 + $0x28] sm:$0xf]
        %v561 = vld [vmem:[%s2 + $0x2c] sm:$0xf]
        %v562 = vld [vmem:[%s2 + $0x30] sm:$0xf]
        %v563 = vld [vmem:[%s2 + $0x34] sm:$0xf]
        %v564 = vld [vmem:[%s2 + $0x38] sm:$0xf]
        %v565 = vld [vmem:[%s2 + $0x3c] sm:$0xf]
        %v566 = vld [vmem:[%s2 + $0x40] sm:$0xf]
        %v567 = vld [vmem:[%s2 + $0x44] sm:$0xf]
        %v568 = vld [vmem:[%s2 + $0x48] sm:$0xf]
        %v569 = vld [vmem:[%s2 + $0x4c] sm:$0xf]
        %v570 = vld [vmem:[%s2 + $0x50] sm:$0xf]
        %v571 = vld [vmem:[%s2 + $0x54] sm:$0xf]
        %v572 = vld [vmem:[%s2 + $0x58] sm:$0xf]
        %v573 = vld [vmem:[%s2 + $0x5c] sm:$0xf]
        %v574 = vld [vmem:[%s2 + $0x60] sm:$0xf]
        %v575 = vld [vmem:[%s2 + $0x64] sm:$0xf]
        %v576 = vld [vmem:[%s2 + $0x68] sm:$0xf]
        %v577 = vld [vmem:[%s2 + $0x6c] sm:$0xf]
        %v578 = vld [vmem:[%s2 + $0x70] sm:$0xf]
        %v579 = vld [vmem:[%s2 + $0x74] sm:$0xf]
        %v580 = vld [vmem:[%s2 + $0x78] sm:$0xf]
        %v581 = vld [vmem:[%s2 + $0x7c] sm:$0xf]
        %v582 = vld [vmem:[%s2 + $0x80] sm:$0xf]
        %v583 = vld [vmem:[%s2 + $0x84] sm:$0xf]
        %v584 = vld [vmem:[%s2 + $0x88] sm:$0xf]
        %v585 = vld [vmem:[%s2 + $0x8c] sm:$0xf]
        %v586 = vld [vmem:[%s2 + $0x90] sm:$0xf]
        %v587 = vld [vmem:[%s2 + $0x94] sm:$0xf]
        %v588 = vld [vmem:[%s2 + $0x98] sm:$0xf]
        %v589 = vld [vmem:[%s2 + $0x9c] sm:$0xf]
        %v590 = vld [vmem:[%s2 + $0xa0] sm:$0xf]
        %v591 = vld [vmem:[%s2 + $0xa4] sm:$0xf]
        %v592 = vld [vmem:[%s2 + $0xa8] sm:$0xf]
        %v593 = vld [vmem:[%s2 + $0xac] sm:$0xf]
        %v594 = vld [vmem:[%s2 + $0xb0] sm:$0xf]
        %v595 = vld [vmem:[%s2 + $0xb4] sm:$0xf]
        %v596 = vld [vmem:[%s2 + $0xb8] sm:$0xf]
        %v597 = vld [vmem:[%s2 + $0xbc] sm:$0xf]
        %v598 = vld [vmem:[%s2 + $0xc0] sm:$0xf]
        %v599 = vld [vmem:[%s2 + $0xc4] sm:$0xf]
        %v600 = vld [vmem:[%s2 + $0xc8] sm:$0xf]
        %v601 = vld [vmem:[%s2 + $0xcc] sm:$0xf]
        %v602 = vld [vmem:[%s2 + $0xd0] sm:$0xf]
        %v603 = vld [vmem:[%s2 + $0xd4] sm:$0xf]
        %v604 = vld [vmem:[%s2 + $0xd8] sm:$0xf]
        %v605 = vld [vmem:[%s2 + $0xdc] sm:$0xf]
        %v606 = vld [vmem:[%s2 + $0xe0] sm:$0xf]
        %v607 = vld [vmem:[%s2 + $0xe4] sm:$0xf]
        %v608 = vld [vmem:[%s2 + $0xe8] sm:$0xf]
        %v609 = vld [vmem:[%s2 + $0xec] sm:$0xf]
        %v610 = vld [vmem:[%s2 + $0xf0] sm:$0xf]
        %v611 = vld [vmem:[%s2 + $0xf4] sm:$0xf]
        %v612 = vld [vmem:[%s2 + $0xf8] sm:$0xf]
        %v613 = vld [vmem:[%s2 + $0xfc] sm:$0xf]
        %v614 = vld [vmem:[%s2 + $0x100] sm:$0xf]
        %v615 = vld [vmem:[%s2 + $0x104] sm:$0xf]
        %v616 = vld [vmem:[%s2 + $0x108] sm:$0xf]
        %v617 = vld [vmem:[%s2 + $0x10c] sm:$0xf]
        %v618 = vld [vmem:[%s2 + $0x110] sm:$0xf]
        %v619 = vld [vmem:[%s2 + $0x114] sm:$0xf]
        %v620 = vld [vmem:[%s2 + $0x118] sm:$0xf]
        %v621 = vld [vmem:[%s2 + $0x11c] sm:$0xf]
        %v622 = vld [vmem:[%s2 + $0x120] sm:$0xf]
        %v623 = vld [vmem:[%s2 + $0x124] sm:$0xf]
        %v624 = vld [vmem:[%s2 + $0x128] sm:$0xf]
        %v625 = vld [vmem:[%s2 + $0x12c] sm:$0xf]
        %v626 = vld [vmem:[%s2 + $0x130] sm:$0xf]
        %v627 = vld [vmem:[%s2 + $0x134] sm:$0xf]
        %v628 = vld [vmem:[%s2 + $0x138] sm:$0xf]
        %v629 = vld [vmem:[%s2 + $0x13c] sm:$0xf]
        %v630 = vld [vmem:[%s2 + $0x140] sm:$0xf]
        %v631 = vld [vmem:[%s2 + $0x144] sm:$0xf]
        %v632 = vld [vmem:[%s2 + $0x148] sm:$0xf]
        %v633 = vld [vmem:[%s2 + $0x14c] sm:$0xf]
        %v634 = vld [vmem:[%s2 + $0x150] sm:$0xf]
        %v635 = vld [vmem:[%s2 + $0x154] sm:$0xf]
        %v636 = vld [vmem:[%s2 + $0x158] sm:$0xf]
        %v637 = vld [vmem:[%s2 + $0x15c] sm:$0xf]
        %v638 = vld [vmem:[%s2 + $0x160] sm:$0xf]
        %v639 = vld [vmem:[%s2 + $0x164] sm:$0xf]
        %v640 = vld [vmem:[%s2 + $0x168] sm:$0xf]
        %v641 = vld [vmem:[%s2 + $0x16c] sm:$0xf]
        %v642 = vld [vmem:[%s2 + $0x170] sm:$0xf]
        %v643 = vld [vmem:[%s2 + $0x174] sm:$0xf]
        %v644 = vld [vmem:[%s2 + $0x178] sm:$0xf]
        %v645 = vld [vmem:[%s2 + $0x17c] sm:$0xf]
        %v646 = vld [vmem:[%s2 + $0x180] sm:$0xf]
        %v647 = vld [vmem:[%s2 + $0x184] sm:$0xf]
        %v648 = vld [vmem:[%s2 + $0x188] sm:$0xf]
        %v649 = vld [vmem:[%s2 + $0x18c] sm:$0xf]
        %v650 = vld [vmem:[%s2 + $0x190] sm:$0xf]
        %v651 = vld [vmem:[%s2 + $0x194] sm:$0xf]
        %v652 = vld [vmem:[%s2 + $0x198] sm:$0xf]
        %v653 = vld [vmem:[%s2 + $0x19c] sm:$0xf]
        %v654 = vld [vmem:[%s2 + $0x1a0] sm:$0xf]
        %v655 = vld [vmem:[%s2 + $0x1a4] sm:$0xf]
        %v656 = vld [vmem:[%s2 + $0x1a8] sm:$0xf]
        %v657 = vld [vmem:[%s2 + $0x1ac] sm:$0xf]
        %v658 = vld [vmem:[%s2 + $0x1b0] sm:$0xf]
        %v659 = vld [vmem:[%s2 + $0x1b4] sm:$0xf]
        %v660 = vld [vmem:[%s2 + $0x1b8] sm:$0xf]
        %v661 = vld [vmem:[%s2 + $0x1bc] sm:$0xf]
        %v662 = vld [vmem:[%s2 + $0x1c0] sm:$0xf]
        %v663 = vld [vmem:[%s2 + $0x1c4] sm:$0xf]
        %v664 = vld [vmem:[%s2 + $0x1c8] sm:$0xf]
        %v665 = vld [vmem:[%s2 + $0x1cc] sm:$0xf]
        %v666 = vld [vmem:[%s2 + $0x1d0] sm:$0xf]
        %v667 = vld [vmem:[%s2 + $0x1d4] sm:$0xf]
        %v668 = vld [vmem:[%s2 + $0x1d8] sm:$0xf]
        %v669 = vld [vmem:[%s2 + $0x1dc] sm:$0xf]
        %v670 = vld [vmem:[%s2 + $0x1e0] sm:$0xf]
        %v671 = vld [vmem:[%s2 + $0x1e4] sm:$0xf]
        %v672 = vld [vmem:[%s2 + $0x1e8] sm:$0xf]
        %v673 = vld [vmem:[%s2 + $0x1ec] sm:$0xf]
        %v674 = vld [vmem:[%s2 + $0x1f0] sm:$0xf]
        %v675 = vld [vmem:[%s2 + $0x1f4] sm:$0xf]
        %v676 = vld [vmem:[%s2 + $0x1f8] sm:$0xf]
        %v677 = vld [vmem:[%s2 + $0x1fc] sm:$0xf]
        %v678 = vld [vmem:[%s2 + $0x200] sm:$0xf]
        %v679 = vld [vmem:[%s2 + $0x204] sm:$0xf]
        %v680 = vld [vmem:[%s2 + $0x208] sm:$0xf]
        %v681 = vld [vmem:[%s2 + $0x20c] sm:$0xf]
        %v682 = vld [vmem:[%s2 + $0x210] sm:$0xf]
        %v683 = vld [vmem:[%s2 + $0x214] sm:$0xf]
        %v684 = vld [vmem:[%s2 + $0x218] sm:$0xf]
        %v685 = vld [vmem:[%s2 + $0x21c] sm:$0xf]
        %v686 = vld [vmem:[%s2 + $0x220] sm:$0xf]
        %v687 = vld [vmem:[%s2 + $0x224] sm:$0xf]
        %v688 = vld [vmem:[%s2 + $0x228] sm:$0xf]
        %v689 = vld [vmem:[%s2 + $0x22c] sm:$0xf]
        %v690 = vld [vmem:[%s2 + $0x230] sm:$0xf]
        %v691 = vld [vmem:[%s2 + $0x234] sm:$0xf]
        %v692 = vld [vmem:[%s2 + $0x238] sm:$0xf]
        %v693 = vld [vmem:[%s2 + $0x23c] sm:$0xf]
        %v694 = vld [vmem:[%s2 + $0x240] sm:$0xf]
        %v695 = vld [vmem:[%s2 + $0x244] sm:$0xf]
        %v696 = vld [vmem:[%s2 + $0x248] sm:$0xf]
        %v697 = vld [vmem:[%s2 + $0x24c] sm:$0xf]
        %v698 = vld [vmem:[%s2 + $0x250] sm:$0xf]
        %v699 = vld [vmem:[%s2 + $0x254] sm:$0xf]
        %v700 = vld [vmem:[%s2 + $0x258] sm:$0xf]
        %v701 = vld [vmem:[%s2 + $0x25c] sm:$0xf]
        %v702 = vld [vmem:[%s2 + $0x260] sm:$0xf]
        %v703 = vld [vmem:[%s2 + $0x264] sm:$0xf]
        %v704 = vld [vmem:[%s2 + $0x268] sm:$0xf]
        %v705 = vld [vmem:[%s2 + $0x26c] sm:$0xf]
        %v706 = vld [vmem:[%s2 + $0x270] sm:$0xf]
        %v707 = vld [vmem:[%s2 + $0x274] sm:$0xf]
        %v708 = vld [vmem:[%s2 + $0x278] sm:$0xf]
        %v709 = vld [vmem:[%s2 + $0x27c] sm:$0xf]
        %v710 = vld [vmem:[%s2 + $0x280] sm:$0xf]
        %v711 = vld [vmem:[%s2 + $0x284] sm:$0xf]
        %v712 = vld [vmem:[%s2 + $0x288] sm:$0xf]
        %v713 = vld [vmem:[%s2 + $0x28c] sm:$0xf]
        %v714 = vld [vmem:[%s2 + $0x290] sm:$0xf]
        %v715 = vld [vmem:[%s2 + $0x294] sm:$0xf]
        %v716 = vld [vmem:[%s2 + $0x298] sm:$0xf]
        %v717 = vld [vmem:[%s2 + $0x29c] sm:$0xf]
        %v718 = vld [vmem:[%s2 + $0x2a0] sm:$0xf]
        %v719 = vld [vmem:[%s2 + $0x2a4] sm:$0xf]
        %v720 = vld [vmem:[%s2 + $0x2a8] sm:$0xf]
        %v721 = vld [vmem:[%s2 + $0x2ac] sm:$0xf]
        %v722 = vld [vmem:[%s2 + $0x2b0] sm:$0xf]
        %v723 = vld [vmem:[%s2 + $0x2b4] sm:$0xf]
        %v724 = vld [vmem:[%s2 + $0x2b8] sm:$0xf]
        %v725 = vld [vmem:[%s2 + $0x2bc] sm:$0xf]
        %v726 = vld [vmem:[%s2 + $0x2c0] sm:$0xf]
        %v727 = vld [vmem:[%s2 + $0x2c4] sm:$0xf]
        %v728 = vld [vmem:[%s2 + $0x2c8] sm:$0xf]
        %v729 = vld [vmem:[%s2 + $0x2cc] sm:$0xf]
        %v730 = vld [vmem:[%s2 + $0x2d0] sm:$0xf]
        %v731 = vld [vmem:[%s2 + $0x2d4] sm:$0xf]
        %v732 = vld [vmem:[%s2 + $0x2d8] sm:$0xf]
        %v733 = vld [vmem:[%s2 + $0x2dc] sm:$0xf]
        %v734 = vld [vmem:[%s2 + $0x2e0] sm:$0xf]
        %v735 = vld [vmem:[%s2 + $0x2e4] sm:$0xf]
        %v736 = vld [vmem:[%s2 + $0x2e8] sm:$0xf]
        %v737 = vld [vmem:[%s2 + $0x2ec] sm:$0xf]
        %v738 = vld [vmem:[%s2 + $0x2f0] sm:$0xf]
        %v739 = vld [vmem:[%s2 + $0x2f4] sm:$0xf]
        %v740 = vld [vmem:[%s2 + $0x2f8] sm:$0xf]
        %v741 = vld [vmem:[%s2 + $0x2fc] sm:$0xf]
        %v742 = vld [vmem:[%s2 + $0x300] sm:$0xf]
        %v743 = vld [vmem:[%s2 + $0x304] sm:$0xf]
        %v744 = vld [vmem:[%s2 + $0x308] sm:$0xf]
        %v745 = vld [vmem:[%s2 + $0x30c] sm:$0xf]
        %v746 = vld [vmem:[%s2 + $0x310] sm:$0xf]
        %v747 = vld [vmem:[%s2 + $0x314] sm:$0xf]
        %v748 = vld [vmem:[%s2 + $0x318] sm:$0xf]
        %v749 = vld [vmem:[%s2 + $0x31c] sm:$0xf]
        %v750 = vld [vmem:[%s2 + $0x320] sm:$0xf]
        %v751 = vld [vmem:[%s2 + $0x324] sm:$0xf]
        %v752 = vld [vmem:[%s2 + $0x328] sm:$0xf]
        %v753 = vld [vmem:[%s2 + $0x32c] sm:$0xf]
        %v754 = vld [vmem:[%s2 + $0x330] sm:$0xf]
        %v755 = vld [vmem:[%s2 + $0x334] sm:$0xf]
        %v756 = vld [vmem:[%s2 + $0x338] sm:$0xf]
        %v757 = vld [vmem:[%s2 + $0x33c] sm:$0xf]
        %v758 = vld [vmem:[%s2 + $0x340] sm:$0xf]
        %v759 = vld [vmem:[%s2 + $0x344] sm:$0xf]
        %v760 = vld [vmem:[%s2 + $0x348] sm:$0xf]
        %v761 = vld [vmem:[%s2 + $0x34c] sm:$0xf]
        %v762 = vld [vmem:[%s2 + $0x350] sm:$0xf]
        %v763 = vld [vmem:[%s2 + $0x354] sm:$0xf]
        %v764 = vld [vmem:[%s2 + $0x358] sm:$0xf]
        %v765 = vld [vmem:[%s2 + $0x35c] sm:$0xf]
        %v766 = vld [vmem:[%s2 + $0x360] sm:$0xf]
        %v767 = vld [vmem:[%s2 + $0x364] sm:$0xf]
        %v768 = vld [vmem:[%s2 + $0x368] sm:$0xf]
        %v769 = vld [vmem:[%s2 + $0x36c] sm:$0xf]
        %v770 = vld [vmem:[%s2 + $0x370] sm:$0xf]
        %v771 = vld [vmem:[%s2 + $0x374] sm:$0xf]
        %v772 = vld [vmem:[%s2 + $0x378] sm:$0xf]
        %v773 = vld [vmem:[%s2 + $0x37c] sm:$0xf]
        %v774 = vld [vmem:[%s2 + $0x380] sm:$0xf]
        %v775 = vld [vmem:[%s2 + $0x384] sm:$0xf]
        %v776 = vld [vmem:[%s2 + $0x388] sm:$0xf]
        %v777 = vld [vmem:[%s2 + $0x38c] sm:$0xf]
        %v778 = vld [vmem:[%s2 + $0x390] sm:$0xf]
        %v779 = vld [vmem:[%s2 + $0x394] sm:$0xf]
        %v780 = vld [vmem:[%s2 + $0x398] sm:$0xf]
        %v781 = vld [vmem:[%s2 + $0x39c] sm:$0xf]
        %v782 = vld [vmem:[%s2 + $0x3a0] sm:$0xf]
        %v783 = vld [vmem:[%s2 + $0x3a4] sm:$0xf]
        %v784 = vld [vmem:[%s2 + $0x3a8] sm:$0xf]
        %v785 = vld [vmem:[%s2 + $0x3ac] sm:$0xf]
        %v786 = vld [vmem:[%s2 + $0x3b0] sm:$0xf]
        %v787 = vld [vmem:[%s2 + $0x3b4] sm:$0xf]
        %v788 = vld [vmem:[%s2 + $0x3b8] sm:$0xf]
        %v789 = vld [vmem:[%s2 + $0x3bc] sm:$0xf]
        %v790 = vld [vmem:[%s2 + $0x3c0] sm:$0xf]
        %v791 = vld [vmem:[%s2 + $0x3c4] sm:$0xf]
        %v792 = vld [vmem:[%s2 + $0x3c8] sm:$0xf]
        %v793 = vld [vmem:[%s2 + $0x3cc] sm:$0xf]
        %v794 = vld [vmem:[%s2 + $0x3d0] sm:$0xf]
        %v795 = vld [vmem:[%s2 + $0x3d4] sm:$0xf]
        %v796 = vld [vmem:[%s2 + $0x3d8] sm:$0xf]
        %v797 = vld [vmem:[%s2 + $0x3dc] sm:$0xf]
        %v798 = vld [vmem:[%s2 + $0x3e0] sm:$0xf]
        %v799 = vld [vmem:[%s2 + $0x3e4] sm:$0xf]
        %v800 = vld [vmem:[%s2 + $0x3e8] sm:$0xf]
        %v801 = vld [vmem:[%s2 + $0x3ec] sm:$0xf]
        %v802 = vld [vmem:[%s2 + $0x3f0] sm:$0xf]
        %v803 = vld [vmem:[%s2 + $0x3f4] sm:$0xf]
        %v804 = vld [vmem:[%s2 + $0x3f8] sm:$0xf]
        %v805 = vld [vmem:[%s2 + $0x3fc] sm:$0xf]
        %v806 = vld [vmem:[%s3] sm:$0xff]
        %v807 = vld [vmem:[%s3 + $0x8] sm:$0xff]
        %v810 = vperm.slane %v806, 0
        %v811 = vperm.slane %v806, 1
        %v812 = vperm.slane %v806, 2
        %v813 = vperm.slane %v806, 3
        %v814 = vperm.slane %v806, 4
        %v815 = vperm.slane %v806, 5
        %v816 = vperm.slane %v806, 6
        %v817 = vperm.slane %v806, 7
        %v818 = vperm.slane %v807, 0
        %v819 = vperm.slane %v807, 1
        %v820 = vperm.slane %v807, 2
        %v821 = vperm.slane %v807, 3
        %v822 = vperm.slane %v807, 4
        %v823 = vperm.slane %v807, 5
        %v824 = vperm.slane %v807, 6
        %v825 = vperm.slane %v807, 7
        %v1098 = vunpack.c.l.b16 %v550
        %v1099 = vunpack.c.l.b16 %v551
        %v1100 = vunpack.c.l.b16 %v552
        %v1101 = vunpack.c.l.b16 %v553
        %v1102 = vunpack.c.l.b16 %v554
        %v1103 = vunpack.c.l.b16 %v555
        %v1104 = vunpack.c.l.b16 %v556
        %v1105 = vunpack.c.l.b16 %v557
        %v1106 = vunpack.c.l.b16 %v558
        %v1107 = vunpack.c.l.b16 %v559
        %v1108 = vunpack.c.l.b16 %v560
        %v1109 = vunpack.c.l.b16 %v561
        %v1110 = vunpack.c.l.b16 %v562
        %v1111 = vunpack.c.l.b16 %v563
        %v1112 = vunpack.c.l.b16 %v564
        %v1113 = vunpack.c.l.b16 %v565
        %v1114 = vunpack.c.l.b16 %v566
        %v1115 = vunpack.c.l.b16 %v567
        %v1116 = vunpack.c.l.b16 %v568
        %v1117 = vunpack.c.l.b16 %v569
        %v1118 = vunpack.c.l.b16 %v570
        %v1119 = vunpack.c.l.b16 %v571
        %v1120 = vunpack.c.l.b16 %v572
        %v1121 = vunpack.c.l.b16 %v573
        %v1122 = vunpack.c.l.b16 %v574
        %v1123 = vunpack.c.l.b16 %v575
        %v1124 = vunpack.c.l.b16 %v576
        %v1125 = vunpack.c.l.b16 %v577
        %v1126 = vunpack.c.l.b16 %v578
        %v1127 = vunpack.c.l.b16 %v579
        %v1128 = vunpack.c.l.b16 %v580
        %v1129 = vunpack.c.l.b16 %v581
        %v1130 = vunpack.c.l.b16 %v582
        %v1131 = vunpack.c.l.b16 %v583
        %v1132 = vunpack.c.l.b16 %v584
        %v1133 = vunpack.c.l.b16 %v585
        %v1134 = vunpack.c.l.b16 %v586
        %v1135 = vunpack.c.l.b16 %v587
        %v1136 = vunpack.c.l.b16 %v588
        %v1137 = vunpack.c.l.b16 %v589
        %v1138 = vunpack.c.l.b16 %v590
        %v1139 = vunpack.c.l.b16 %v591
        %v1140 = vunpack.c.l.b16 %v592
        %v1141 = vunpack.c.l.b16 %v593
        %v1142 = vunpack.c.l.b16 %v594
        %v1143 = vunpack.c.l.b16 %v595
        %v1144 = vunpack.c.l.b16 %v596
        %v1145 = vunpack.c.l.b16 %v597
        %v1146 = vunpack.c.l.b16 %v598
        %v1147 = vunpack.c.l.b16 %v599
        %v1148 = vunpack.c.l.b16 %v600
        %v1149 = vunpack.c.l.b16 %v601
        %v1150 = vunpack.c.l.b16 %v602
        %v1151 = vunpack.c.l.b16 %v603
        %v1152 = vunpack.c.l.b16 %v604
        %v1153 = vunpack.c.l.b16 %v605
        %v1154 = vunpack.c.l.b16 %v606
        %v1155 = vunpack.c.l.b16 %v607
        %v1156 = vunpack.c.l.b16 %v608
        %v1157 = vunpack.c.l.b16 %v609
        %v1158 = vunpack.c.l.b16 %v610
        %v1159 = vunpack.c.l.b16 %v611
        %v1160 = vunpack.c.l.b16 %v612
        %v1161 = vunpack.c.l.b16 %v613
        %v1162 = vunpack.c.l.b16 %v614
        %v1163 = vunpack.c.l.b16 %v615
        %v1164 = vunpack.c.l.b16 %v616
        %v1165 = vunpack.c.l.b16 %v617
        %v1166 = vunpack.c.l.b16 %v618
        %v1167 = vunpack.c.l.b16 %v619
        %v1168 = vunpack.c.l.b16 %v620
        %v1169 = vunpack.c.l.b16 %v621
        %v1170 = vunpack.c.l.b16 %v622
        %v1171 = vunpack.c.l.b16 %v623
        %v1172 = vunpack.c.l.b16 %v624
        %v1173 = vunpack.c.l.b16 %v625
        %v1174 = vunpack.c.l.b16 %v626
        %v1175 = vunpack.c.l.b16 %v627
        %v1176 = vunpack.c.l.b16 %v628
        %v1177 = vunpack.c.l.b16 %v629
        %v1178 = vunpack.c.l.b16 %v630
        %v1179 = vunpack.c.l.b16 %v631
        %v1180 = vunpack.c.l.b16 %v632
        %v1181 = vunpack.c.l.b16 %v633
        %v1182 = vunpack.c.l.b16 %v634
        %v1183 = vunpack.c.l.b16 %v635
        %v1184 = vunpack.c.l.b16 %v636
        %v1185 = vunpack.c.l.b16 %v637
        %v1186 = vunpack.c.l.b16 %v638
        %v1187 = vunpack.c.l.b16 %v639
        %v1188 = vunpack.c.l.b16 %v640
        %v1189 = vunpack.c.l.b16 %v641
        %v1190 = vunpack.c.l.b16 %v642
        %v1191 = vunpack.c.l.b16 %v643
        %v1192 = vunpack.c.l.b16 %v644
        %v1193 = vunpack.c.l.b16 %v645
        %v1194 = vunpack.c.l.b16 %v646
        %v1195 = vunpack.c.l.b16 %v647
        %v1196 = vunpack.c.l.b16 %v648
        %v1197 = vunpack.c.l.b16 %v649
        %v1198 = vunpack.c.l.b16 %v650
        %v1199 = vunpack.c.l.b16 %v651
        %v1200 = vunpack.c.l.b16 %v652
        %v1201 = vunpack.c.l.b16 %v653
        %v1202 = vunpack.c.l.b16 %v654
        %v1203 = vunpack.c.l.b16 %v655
        %v1204 = vunpack.c.l.b16 %v656
        %v1205 = vunpack.c.l.b16 %v657
        %v1206 = vunpack.c.l.b16 %v658
        %v1207 = vunpack.c.l.b16 %v659
        %v1208 = vunpack.c.l.b16 %v660
        %v1209 = vunpack.c.l.b16 %v661
        %v1210 = vunpack.c.l.b16 %v662
        %v1211 = vunpack.c.l.b16 %v663
        %v1212 = vunpack.c.l.b16 %v664
        %v1213 = vunpack.c.l.b16 %v665
        %v1214 = vunpack.c.l.b16 %v666
        %v1215 = vunpack.c.l.b16 %v667
        %v1216 = vunpack.c.l.b16 %v668
        %v1217 = vunpack.c.l.b16 %v669
        %v1218 = vunpack.c.l.b16 %v670
        %v1219 = vunpack.c.l.b16 %v671
        %v1220 = vunpack.c.l.b16 %v672
        %v1221 = vunpack.c.l.b16 %v673
        %v1222 = vunpack.c.l.b16 %v674
        %v1223 = vunpack.c.l.b16 %v675
        %v1224 = vunpack.c.l.b16 %v676
        %v1225 = vunpack.c.l.b16 %v677
        %v1226 = vunpack.c.l.b16 %v678
        %v1227 = vunpack.c.l.b16 %v679
        %v1228 = vunpack.c.l.b16 %v680
        %v1229 = vunpack.c.l.b16 %v681
        %v1230 = vunpack.c.l.b16 %v682
        %v1231 = vunpack.c.l.b16 %v683
        %v1232 = vunpack.c.l.b16 %v684
        %v1233 = vunpack.c.l.b16 %v685
        %v1234 = vunpack.c.l.b16 %v686
        %v1235 = vunpack.c.l.b16 %v687
        %v1236 = vunpack.c.l.b16 %v688
        %v1237 = vunpack.c.l.b16 %v689
        %v1238 = vunpack.c.l.b16 %v690
        %v1239 = vunpack.c.l.b16 %v691
        %v1240 = vunpack.c.l.b16 %v692
        %v1241 = vunpack.c.l.b16 %v693
        %v1242 = vunpack.c.l.b16 %v694
        %v1243 = vunpack.c.l.b16 %v695
        %v1244 = vunpack.c.l.b16 %v696
        %v1245 = vunpack.c.l.b16 %v697
        %v1246 = vunpack.c.l.b16 %v698
        %v1247 = vunpack.c.l.b16 %v699
        %v1248 = vunpack.c.l.b16 %v700
        %v1249 = vunpack.c.l.b16 %v701
        %v1250 = vunpack.c.l.b16 %v702
        %v1251 = vunpack.c.l.b16 %v703
        %v1252 = vunpack.c.l.b16 %v704
        %v1253 = vunpack.c.l.b16 %v705
        %v1254 = vunpack.c.l.b16 %v706
        %v1255 = vunpack.c.l.b16 %v707
        %v1256 = vunpack.c.l.b16 %v708
        %v1257 = vunpack.c.l.b16 %v709
        %v1258 = vunpack.c.l.b16 %v710
        %v1259 = vunpack.c.l.b16 %v711
        %v1260 = vunpack.c.l.b16 %v712
        %v1261 = vunpack.c.l.b16 %v713
        %v1262 = vunpack.c.l.b16 %v714
        %v1263 = vunpack.c.l.b16 %v715
        %v1264 = vunpack.c.l.b16 %v716
        %v1265 = vunpack.c.l.b16 %v717
        %v1266 = vunpack.c.l.b16 %v718
        %v1267 = vunpack.c.l.b16 %v719
        %v1268 = vunpack.c.l.b16 %v720
        %v1269 = vunpack.c.l.b16 %v721
        %v1270 = vunpack.c.l.b16 %v722
        %v1271 = vunpack.c.l.b16 %v723
        %v1272 = vunpack.c.l.b16 %v724
        %v1273 = vunpack.c.l.b16 %v725
        %v1274 = vunpack.c.l.b16 %v726
        %v1275 = vunpack.c.l.b16 %v727
        %v1276 = vunpack.c.l.b16 %v728
        %v1277 = vunpack.c.l.b16 %v729
        %v1278 = vunpack.c.l.b16 %v730
        %v1279 = vunpack.c.l.b16 %v731
        %v1280 = vunpack.c.l.b16 %v732
        %v1281 = vunpack.c.l.b16 %v733
        %v1282 = vunpack.c.l.b16 %v734
        %v1283 = vunpack.c.l.b16 %v735
        %v1284 = vunpack.c.l.b16 %v736
        %v1285 = vunpack.c.l.b16 %v737
        %v1286 = vunpack.c.l.b16 %v738
        %v1287 = vunpack.c.l.b16 %v739
        %v1288 = vunpack.c.l.b16 %v740
        %v1289 = vunpack.c.l.b16 %v741
        %v1290 = vunpack.c.l.b16 %v742
        %v1291 = vunpack.c.l.b16 %v743
        %v1292 = vunpack.c.l.b16 %v744
        %v1293 = vunpack.c.l.b16 %v745
        %v1294 = vunpack.c.l.b16 %v746
        %v1295 = vunpack.c.l.b16 %v747
        %v1296 = vunpack.c.l.b16 %v748
        %v1297 = vunpack.c.l.b16 %v749
        %v1298 = vunpack.c.l.b16 %v750
        %v1299 = vunpack.c.l.b16 %v751
        %v1300 = vunpack.c.l.b16 %v752
        %v1301 = vunpack.c.l.b16 %v753
        %v1302 = vunpack.c.l.b16 %v754
        %v1303 = vunpack.c.l.b16 %v755
        %v1304 = vunpack.c.l.b16 %v756
        %v1305 = vunpack.c.l.b16 %v757
        %v1306 = vunpack.c.l.b16 %v758
        %v1307 = vunpack.c.l.b16 %v759
        %v1308 = vunpack.c.l.b16 %v760
        %v1309 = vunpack.c.l.b16 %v761
        %v1310 = vunpack.c.l.b16 %v762
        %v1311 = vunpack.c.l.b16 %v763
        %v1312 = vunpack.c.l.b16 %v764
        %v1313 = vunpack.c.l.b16 %v765
        %v1314 = vunpack.c.l.b16 %v766
        %v1315 = vunpack.c.l.b16 %v767
        %v1316 = vunpack.c.l.b16 %v768
        %v1317 = vunpack.c.l.b16 %v769
        %v1318 = vunpack.c.l.b16 %v770
        %v1319 = vunpack.c.l.b16 %v771
        %v1320 = vunpack.c.l.b16 %v772
        %v1321 = vunpack.c.l.b16 %v773
        %v1322 = vunpack.c.l.b16 %v774
        %v1323 = vunpack.c.l.b16 %v775
        %v1324 = vunpack.c.l.b16 %v776
        %v1325 = vunpack.c.l.b16 %v777
        %v1326 = vunpack.c.l.b16 %v778
        %v1327 = vunpack.c.l.b16 %v779
        %v1328 = vunpack.c.l.b16 %v780
        %v1329 = vunpack.c.l.b16 %v781
        %v1330 = vunpack.c.l.b16 %v782
        %v1331 = vunpack.c.l.b16 %v783
        %v1332 = vunpack.c.l.b16 %v784
        %v1333 = vunpack.c.l.b16 %v785
        %v1334 = vunpack.c.l.b16 %v786
        %v1335 = vunpack.c.l.b16 %v787
        %v1336 = vunpack.c.l.b16 %v788
        %v1337 = vunpack.c.l.b16 %v789
        %v1338 = vunpack.c.l.b16 %v790
        %v1339 = vunpack.c.l.b16 %v791
        %v1340 = vunpack.c.l.b16 %v792
        %v1341 = vunpack.c.l.b16 %v793
        %v1342 = vunpack.c.l.b16 %v794
        %v1343 = vunpack.c.l.b16 %v795
        %v1344 = vunpack.c.l.b16 %v796
        %v1345 = vunpack.c.l.b16 %v797
        %v1346 = vunpack.c.l.b16 %v798
        %v1347 = vunpack.c.l.b16 %v799
        %v1348 = vunpack.c.l.b16 %v800
        %v1349 = vunpack.c.l.b16 %v801
        %v1350 = vunpack.c.l.b16 %v802
        %v1351 = vunpack.c.l.b16 %v803
        %v1352 = vunpack.c.l.b16 %v804
        %v1353 = vunpack.c.l.b16 %v805
        %v1354 = vpack.c.b16 %v1099, %v1098
        %v1355 = vpack.c.b16 %v1101, %v1100
        %v1356 = vpack.c.b16 %v1103, %v1102
        %v1357 = vpack.c.b16 %v1105, %v1104
        %v1358 = vpack.c.b16 %v1107, %v1106
        %v1359 = vpack.c.b16 %v1109, %v1108
        %v1360 = vpack.c.b16 %v1111, %v1110
        %v1361 = vpack.c.b16 %v1113, %v1112
        %v1362 = vpack.c.b16 %v1115, %v1114
        %v1363 = vpack.c.b16 %v1117, %v1116
        %v1364 = vpack.c.b16 %v1119, %v1118
        %v1365 = vpack.c.b16 %v1121, %v1120
        %v1366 = vpack.c.b16 %v1123, %v1122
        %v1367 = vpack.c.b16 %v1125, %v1124
        %v1368 = vpack.c.b16 %v1127, %v1126
        %v1369 = vpack.c.b16 %v1129, %v1128
        %v1370 = vpack.c.b16 %v1131, %v1130
        %v1371 = vpack.c.b16 %v1133, %v1132
        %v1372 = vpack.c.b16 %v1135, %v1134
        %v1373 = vpack.c.b16 %v1137, %v1136
        %v1374 = vpack.c.b16 %v1139, %v1138
        %v1375 = vpack.c.b16 %v1141, %v1140
        %v1376 = vpack.c.b16 %v1143, %v1142
        %v1377 = vpack.c.b16 %v1145, %v1144
        %v1378 = vpack.c.b16 %v1147, %v1146
        %v1379 = vpack.c.b16 %v1149, %v1148
        %v1380 = vpack.c.b16 %v1151, %v1150
        %v1381 = vpack.c.b16 %v1153, %v1152
        %v1382 = vpack.c.b16 %v1155, %v1154
        %v1383 = vpack.c.b16 %v1157, %v1156
        %v1384 = vpack.c.b16 %v1159, %v1158
        %v1385 = vpack.c.b16 %v1161, %v1160
        %v1386 = vpack.c.b16 %v1163, %v1162
        %v1387 = vpack.c.b16 %v1165, %v1164
        %v1388 = vpack.c.b16 %v1167, %v1166
        %v1389 = vpack.c.b16 %v1169, %v1168
        %v1390 = vpack.c.b16 %v1171, %v1170
        %v1391 = vpack.c.b16 %v1173, %v1172
        %v1392 = vpack.c.b16 %v1175, %v1174
        %v1393 = vpack.c.b16 %v1177, %v1176
        %v1394 = vpack.c.b16 %v1179, %v1178
        %v1395 = vpack.c.b16 %v1181, %v1180
        %v1396 = vpack.c.b16 %v1183, %v1182
        %v1397 = vpack.c.b16 %v1185, %v1184
        %v1398 = vpack.c.b16 %v1187, %v1186
        %v1399 = vpack.c.b16 %v1189, %v1188
        %v1400 = vpack.c.b16 %v1191, %v1190
        %v1401 = vpack.c.b16 %v1193, %v1192
        %v1402 = vpack.c.b16 %v1195, %v1194
        %v1403 = vpack.c.b16 %v1197, %v1196
        %v1404 = vpack.c.b16 %v1199, %v1198
        %v1405 = vpack.c.b16 %v1201, %v1200
        %v1406 = vpack.c.b16 %v1203, %v1202
        %v1407 = vpack.c.b16 %v1205, %v1204
        %v1408 = vpack.c.b16 %v1207, %v1206
        %v1409 = vpack.c.b16 %v1209, %v1208
        %v1410 = vpack.c.b16 %v1211, %v1210
        %v1411 = vpack.c.b16 %v1213, %v1212
        %v1412 = vpack.c.b16 %v1215, %v1214
        %v1413 = vpack.c.b16 %v1217, %v1216
        %v1414 = vpack.c.b16 %v1219, %v1218
        %v1415 = vpack.c.b16 %v1221, %v1220
        %v1416 = vpack.c.b16 %v1223, %v1222
        %v1417 = vpack.c.b16 %v1225, %v1224
        %v1418 = vpack.c.b16 %v1227, %v1226
        %v1419 = vpack.c.b16 %v1229, %v1228
        %v1420 = vpack.c.b16 %v1231, %v1230
        %v1421 = vpack.c.b16 %v1233, %v1232
        %v1422 = vpack.c.b16 %v1235, %v1234
        %v1423 = vpack.c.b16 %v1237, %v1236
        %v1424 = vpack.c.b16 %v1239, %v1238
        %v1425 = vpack.c.b16 %v1241, %v1240
        %v1426 = vpack.c.b16 %v1243, %v1242
        %v1427 = vpack.c.b16 %v1245, %v1244
        %v1428 = vpack.c.b16 %v1247, %v1246
        %v1429 = vpack.c.b16 %v1249, %v1248
        %v1430 = vpack.c.b16 %v1251, %v1250
        %v1431 = vpack.c.b16 %v1253, %v1252
        %v1432 = vpack.c.b16 %v1255, %v1254
        %v1433 = vpack.c.b16 %v1257, %v1256
        %v1434 = vpack.c.b16 %v1259, %v1258
        %v1435 = vpack.c.b16 %v1261, %v1260
        %v1436 = vpack.c.b16 %v1263, %v1262
        %v1437 = vpack.c.b16 %v1265, %v1264
        %v1438 = vpack.c.b16 %v1267, %v1266
        %v1439 = vpack.c.b16 %v1269, %v1268
        %v1440 = vpack.c.b16 %v1271, %v1270
        %v1441 = vpack.c.b16 %v1273, %v1272
        %v1442 = vpack.c.b16 %v1275, %v1274
        %v1443 = vpack.c.b16 %v1277, %v1276
        %v1444 = vpack.c.b16 %v1279, %v1278
        %v1445 = vpack.c.b16 %v1281, %v1280
        %v1446 = vpack.c.b16 %v1283, %v1282
        %v1447 = vpack.c.b16 %v1285, %v1284
        %v1448 = vpack.c.b16 %v1287, %v1286
        %v1449 = vpack.c.b16 %v1289, %v1288
        %v1450 = vpack.c.b16 %v1291, %v1290
        %v1451 = vpack.c.b16 %v1293, %v1292
        %v1452 = vpack.c.b16 %v1295, %v1294
        %v1453 = vpack.c.b16 %v1297, %v1296
        %v1454 = vpack.c.b16 %v1299, %v1298
        %v1455 = vpack.c.b16 %v1301, %v1300
        %v1456 = vpack.c.b16 %v1303, %v1302
        %v1457 = vpack.c.b16 %v1305, %v1304
        %v1458 = vpack.c.b16 %v1307, %v1306
        %v1459 = vpack.c.b16 %v1309, %v1308
        %v1460 = vpack.c.b16 %v1311, %v1310
        %v1461 = vpack.c.b16 %v1313, %v1312
        %v1462 = vpack.c.b16 %v1315, %v1314
        %v1463 = vpack.c.b16 %v1317, %v1316
        %v1464 = vpack.c.b16 %v1319, %v1318
        %v1465 = vpack.c.b16 %v1321, %v1320
        %v1466 = vpack.c.b16 %v1323, %v1322
        %v1467 = vpack.c.b16 %v1325, %v1324
        %v1468 = vpack.c.b16 %v1327, %v1326
        %v1469 = vpack.c.b16 %v1329, %v1328
        %v1470 = vpack.c.b16 %v1331, %v1330
        %v1471 = vpack.c.b16 %v1333, %v1332
        %v1472 = vpack.c.b16 %v1335, %v1334
        %v1473 = vpack.c.b16 %v1337, %v1336
        %v1474 = vpack.c.b16 %v1339, %v1338
        %v1475 = vpack.c.b16 %v1341, %v1340
        %v1476 = vpack.c.b16 %v1343, %v1342
        %v1477 = vpack.c.b16 %v1345, %v1344
        %v1478 = vpack.c.b16 %v1347, %v1346
        %v1479 = vpack.c.b16 %v1349, %v1348
        %v1480 = vpack.c.b16 %v1351, %v1350
        %v1481 = vpack.c.b16 %v1353, %v1352
        %v1483 = vsel %vm446, %v548, 0
        %v1486 = vsel %vm446, %v549, 0
        %v1489 = vsel %vm446, %v1354, 0
        %v1492 = vsel %vm446, %v1355, 0
        %v1495 = vsel %vm446, %v1356, 0
        %v1498 = vsel %vm446, %v1357, 0
        %v1501 = vsel %vm446, %v1358, 0
        %v1504 = vsel %vm446, %v1359, 0
        %v1507 = vsel %vm446, %v1360, 0
        %v1510 = vsel %vm446, %v1361, 0
        %v1513 = vsel %vm446, %v1362, 0
        %v1516 = vsel %vm446, %v1363, 0
        %v1519 = vsel %vm446, %v1364, 0
        %v1522 = vsel %vm446, %v1365, 0
        %v1525 = vsel %vm446, %v1366, 0
        %v1528 = vsel %vm446, %v1367, 0
        %v1531 = vsel %vm446, %v1368, 0
        %v1534 = vsel %vm446, %v1369, 0
        %v1537 = vsel %vm446, %v1370, 0
        %v1540 = vsel %vm446, %v1371, 0
        %v1543 = vsel %vm446, %v1372, 0
        %v1546 = vsel %vm446, %v1373, 0
        %v1549 = vsel %vm446, %v1374, 0
        %v1552 = vsel %vm446, %v1375, 0
        %v1555 = vsel %vm446, %v1376, 0
        %v1558 = vsel %vm446, %v1377, 0
        %v1561 = vsel %vm446, %v1378, 0
        %v1564 = vsel %vm446, %v1379, 0
        %v1567 = vsel %vm446, %v1380, 0
        %v1570 = vsel %vm446, %v1381, 0
        %v1573 = vsel %vm446, %v1382, 0
        %v1576 = vsel %vm446, %v1383, 0
        %v1579 = vsel %vm446, %v1384, 0
        %v1582 = vsel %vm446, %v1385, 0
        %v1585 = vsel %vm446, %v1386, 0
        %v1588 = vsel %vm446, %v1387, 0
        %v1591 = vsel %vm446, %v1388, 0
        %v1594 = vsel %vm446, %v1389, 0
        %v1597 = vsel %vm446, %v1390, 0
        %v1600 = vsel %vm446, %v1391, 0
        %v1603 = vsel %vm446, %v1392, 0
        %v1606 = vsel %vm446, %v1393, 0
        %v1609 = vsel %vm446, %v1394, 0
        %v1612 = vsel %vm446, %v1395, 0
        %v1615 = vsel %vm446, %v1396, 0
        %v1618 = vsel %vm446, %v1397, 0
        %v1621 = vsel %vm446, %v1398, 0
        %v1624 = vsel %vm446, %v1399, 0
        %v1627 = vsel %vm446, %v1400, 0
        %v1630 = vsel %vm446, %v1401, 0
        %v1633 = vsel %vm446, %v1402, 0
        %v1636 = vsel %vm446, %v1403, 0
        %v1639 = vsel %vm446, %v1404, 0
        %v1642 = vsel %vm446, %v1405, 0
        %v1645 = vsel %vm446, %v1406, 0
        %v1648 = vsel %vm446, %v1407, 0
        %v1651 = vsel %vm446, %v1408, 0
        %v1654 = vsel %vm446, %v1409, 0
        %v1657 = vsel %vm446, %v1410, 0
        %v1660 = vsel %vm446, %v1411, 0
        %v1663 = vsel %vm446, %v1412, 0
        %v1666 = vsel %vm446, %v1413, 0
        %v1669 = vsel %vm446, %v1414, 0
        %v1672 = vsel %vm446, %v1415, 0
        %v1675 = vsel %vm446, %v1416, 0
        %v1678 = vsel %vm446, %v1417, 0
        %v1681 = vsel %vm446, %v1418, 0
        %v1684 = vsel %vm446, %v1419, 0
        %v1687 = vsel %vm446, %v1420, 0
        %v1690 = vsel %vm446, %v1421, 0
        %v1693 = vsel %vm446, %v1422, 0
        %v1696 = vsel %vm446, %v1423, 0
        %v1699 = vsel %vm446, %v1424, 0
        %v1702 = vsel %vm446, %v1425, 0
        %v1705 = vsel %vm446, %v1426, 0
        %v1708 = vsel %vm446, %v1427, 0
        %v1711 = vsel %vm446, %v1428, 0
        %v1714 = vsel %vm446, %v1429, 0
        %v1717 = vsel %vm446, %v1430, 0
        %v1720 = vsel %vm446, %v1431, 0
        %v1723 = vsel %vm446, %v1432, 0
        %v1726 = vsel %vm446, %v1433, 0
        %v1729 = vsel %vm446, %v1434, 0
        %v1732 = vsel %vm446, %v1435, 0
        %v1735 = vsel %vm446, %v1436, 0
        %v1738 = vsel %vm446, %v1437, 0
        %v1741 = vsel %vm446, %v1438, 0
        %v1744 = vsel %vm446, %v1439, 0
        %v1747 = vsel %vm446, %v1440, 0
        %v1750 = vsel %vm446, %v1441, 0
        %v1753 = vsel %vm446, %v1442, 0
        %v1756 = vsel %vm446, %v1443, 0
        %v1759 = vsel %vm446, %v1444, 0
        %v1762 = vsel %vm446, %v1445, 0
        %v1765 = vsel %vm446, %v1446, 0
        %v1768 = vsel %vm446, %v1447, 0
        %v1771 = vsel %vm446, %v1448, 0
        %v1774 = vsel %vm446, %v1449, 0
        %v1777 = vsel %vm446, %v1450, 0
        %v1780 = vsel %vm446, %v1451, 0
        %v1783 = vsel %vm446, %v1452, 0
        %v1786 = vsel %vm446, %v1453, 0
        %v1789 = vsel %vm446, %v1454, 0
        %v1792 = vsel %vm446, %v1455, 0
        %v1795 = vsel %vm446, %v1456, 0
        %v1798 = vsel %vm446, %v1457, 0
        %v1801 = vsel %vm446, %v1458, 0
        %v1804 = vsel %vm446, %v1459, 0
        %v1807 = vsel %vm446, %v1460, 0
        %v1810 = vsel %vm446, %v1461, 0
        %v1813 = vsel %vm446, %v1462, 0
        %v1816 = vsel %vm446, %v1463, 0
        %v1819 = vsel %vm446, %v1464, 0
        %v1822 = vsel %vm446, %v1465, 0
        %v1825 = vsel %vm446, %v1466, 0
        %v1828 = vsel %vm446, %v1467, 0
        %v1831 = vsel %vm446, %v1468, 0
        %v1834 = vsel %vm446, %v1469, 0
        %v1837 = vsel %vm446, %v1470, 0
        %v1840 = vsel %vm446, %v1471, 0
        %v1843 = vsel %vm446, %v1472, 0
        %v1846 = vsel %vm446, %v1473, 0
        %v1849 = vsel %vm446, %v1474, 0
        %v1852 = vsel %vm446, %v1475, 0
        %v1855 = vsel %vm446, %v1476, 0
        %v1858 = vsel %vm446, %v1477, 0
        %v1861 = vsel %vm446, %v1478, 0
        %v1864 = vsel %vm446, %v1479, 0
        %v1867 = vsel %vm446, %v1480, 0
        %v1870 = vsel %vm446, %v1481, 0
        %1872 = vmatpush.bf16.xpose.msra.mxu0 %v1510
        %1873 = vmatpush.bf16.xpose.msra.mxu0 %v1507
        %1874 = vmatpush.bf16.xpose.msra.mxu0 %v1504
        %1875 = vmatpush.bf16.xpose.msra.mxu0 %v1501
        %1876 = vmatpush.bf16.xpose.msra.mxu0 %v1498
        %1877 = vmatpush.bf16.xpose.msra.mxu0 %v1495
        %1878 = vmatpush.bf16.xpose.msra.mxu0 %v1492
        %1879 = vmatpush.bf16.xpose.msra.mxu0 %v1489
        %1880 = vmatmul.bf16.gmra.mxu0 %v1483
        %v1881 = vpop.f32.mrf.mxu0
        %v1882 = vadd.f32 %v810, %v1881
        %v1883 = vpop.f32.mrf.mxu0
        %v1884 = vadd.f32 %v810, %v1883
        %1885 = vmatmul.bf16.gmra.mxu0 %v1486
        %v1886 = vpop.f32.mrf.mxu0
        %v1887 = vadd.f32 %v810, %v1886
        %v1888 = vpop.f32.mrf.mxu0
        %v1889 = vadd.f32 %v810, %v1888
        %1890 = vdwg.mxu0
        %1891 = vmatpush.bf16.xpose.msra.mxu0 %v1534
        %1892 = vmatpush.bf16.xpose.msra.mxu0 %v1531
        %1893 = vmatpush.bf16.xpose.msra.mxu0 %v1528
        %1894 = vmatpush.bf16.xpose.msra.mxu0 %v1525
        %1895 = vmatpush.bf16.xpose.msra.mxu0 %v1522
        %1896 = vmatpush.bf16.xpose.msra.mxu0 %v1519
        %1897 = vmatpush.bf16.xpose.msra.mxu0 %v1516
        %1898 = vmatpush.bf16.xpose.msra.mxu0 %v1513
        %1899 = vmatmul.bf16.gmra.mxu0 %v1483
        %v1900 = vpop.f32.mrf.mxu0
        %v1901 = vadd.f32 %v811, %v1900
        %v1902 = vpop.f32.mrf.mxu0
        %v1903 = vadd.f32 %v811, %v1902
        %1904 = vmatmul.bf16.gmra.mxu0 %v1486
        %v1905 = vpop.f32.mrf.mxu0
        %v1906 = vadd.f32 %v811, %v1905
        %v1907 = vpop.f32.mrf.mxu0
        %v1908 = vadd.f32 %v811, %v1907
        %1909 = vdwg.mxu0
        %1910 = vmatpush.bf16.xpose.msra.mxu0 %v1558
        %1911 = vmatpush.bf16.xpose.msra.mxu0 %v1555
        %1912 = vmatpush.bf16.xpose.msra.mxu0 %v1552
        %1913 = vmatpush.bf16.xpose.msra.mxu0 %v1549
        %1914 = vmatpush.bf16.xpose.msra.mxu0 %v1546
        %1915 = vmatpush.bf16.xpose.msra.mxu0 %v1543
        %1916 = vmatpush.bf16.xpose.msra.mxu0 %v1540
        %1917 = vmatpush.bf16.xpose.msra.mxu0 %v1537
        %1918 = vmatmul.bf16.gmra.mxu0 %v1483
        %v1919 = vpop.f32.mrf.mxu0
        %v1920 = vadd.f32 %v812, %v1919
        %v1921 = vpop.f32.mrf.mxu0
        %v1922 = vadd.f32 %v812, %v1921
        %1923 = vmatmul.bf16.gmra.mxu0 %v1486
        %v1924 = vpop.f32.mrf.mxu0
        %v1925 = vadd.f32 %v812, %v1924
        %v1926 = vpop.f32.mrf.mxu0
        %v1927 = vadd.f32 %v812, %v1926
        %1928 = vdwg.mxu0
        %1929 = vmatpush.bf16.xpose.msra.mxu0 %v1582
        %1930 = vmatpush.bf16.xpose.msra.mxu0 %v1579
        %1931 = vmatpush.bf16.xpose.msra.mxu0 %v1576
        %1932 = vmatpush.bf16.xpose.msra.mxu0 %v1573
        %1933 = vmatpush.bf16.xpose.msra.mxu0 %v1570
        %1934 = vmatpush.bf16.xpose.msra.mxu0 %v1567
        %1935 = vmatpush.bf16.xpose.msra.mxu0 %v1564
        %1936 = vmatpush.bf16.xpose.msra.mxu0 %v1561
        %1937 = vmatmul.bf16.gmra.mxu0 %v1483
        %v1938 = vpop.f32.mrf.mxu0
        %v1939 = vadd.f32 %v813, %v1938
        %v1940 = vpop.f32.mrf.mxu0
        %v1941 = vadd.f32 %v813, %v1940
        %1942 = vmatmul.bf16.gmra.mxu0 %v1486
        %v1943 = vpop.f32.mrf.mxu0
        %v1944 = vadd.f32 %v813, %v1943
        %v1945 = vpop.f32.mrf.mxu0
        %v1946 = vadd.f32 %v813, %v1945
        %1947 = vdwg.mxu0
        %1948 = vmatpush.bf16.xpose.msra.mxu0 %v1606
        %1949 = vmatpush.bf16.xpose.msra.mxu0 %v1603
        %1950 = vmatpush.bf16.xpose.msra.mxu0 %v1600
        %1951 = vmatpush.bf16.xpose.msra.mxu0 %v1597
        %1952 = vmatpush.bf16.xpose.msra.mxu0 %v1594
        %1953 = vmatpush.bf16.xpose.msra.mxu0 %v1591
        %1954 = vmatpush.bf16.xpose.msra.mxu0 %v1588
        %1955 = vmatpush.bf16.xpose.msra.mxu0 %v1585
        %1956 = vmatmul.bf16.gmra.mxu0 %v1483
        %v1957 = vpop.f32.mrf.mxu0
        %v1958 = vadd.f32 %v814, %v1957
        %v1959 = vpop.f32.mrf.mxu0
        %v1960 = vadd.f32 %v814, %v1959
        %1961 = vmatmul.bf16.gmra.mxu0 %v1486
        %v1962 = vpop.f32.mrf.mxu0
        %v1963 = vadd.f32 %v814, %v1962
        %v1964 = vpop.f32.mrf.mxu0
        %v1965 = vadd.f32 %v814, %v1964
        %1966 = vdwg.mxu0
        %1967 = vmatpush.bf16.xpose.msra.mxu0 %v1630
        %1968 = vmatpush.bf16.xpose.msra.mxu0 %v1627
        %1969 = vmatpush.bf16.xpose.msra.mxu0 %v1624
        %1970 = vmatpush.bf16.xpose.msra.mxu0 %v1621
        %1971 = vmatpush.bf16.xpose.msra.mxu0 %v1618
        %1972 = vmatpush.bf16.xpose.msra.mxu0 %v1615
        %1973 = vmatpush.bf16.xpose.msra.mxu0 %v1612
        %1974 = vmatpush.bf16.xpose.msra.mxu0 %v1609
        %1975 = vmatmul.bf16.gmra.mxu0 %v1483
        %v1976 = vpop.f32.mrf.mxu0
        %v1977 = vadd.f32 %v815, %v1976
        %v1978 = vpop.f32.mrf.mxu0
        %v1979 = vadd.f32 %v815, %v1978
        %1980 = vmatmul.bf16.gmra.mxu0 %v1486
        %v1981 = vpop.f32.mrf.mxu0
        %v1982 = vadd.f32 %v815, %v1981
        %v1983 = vpop.f32.mrf.mxu0
        %v1984 = vadd.f32 %v815, %v1983
        %1985 = vdwg.mxu0
        %1986 = vmatpush.bf16.xpose.msra.mxu0 %v1654
        %1987 = vmatpush.bf16.xpose.msra.mxu0 %v1651
        %1988 = vmatpush.bf16.xpose.msra.mxu0 %v1648
        %1989 = vmatpush.bf16.xpose.msra.mxu0 %v1645
        %1990 = vmatpush.bf16.xpose.msra.mxu0 %v1642
        %1991 = vmatpush.bf16.xpose.msra.mxu0 %v1639
        %1992 = vmatpush.bf16.xpose.msra.mxu0 %v1636
        %1993 = vmatpush.bf16.xpose.msra.mxu0 %v1633
        %1994 = vmatmul.bf16.gmra.mxu0 %v1483
        %v1995 = vpop.f32.mrf.mxu0
        %v1996 = vadd.f32 %v816, %v1995
        %v1997 = vpop.f32.mrf.mxu0
        %v1998 = vadd.f32 %v816, %v1997
        %1999 = vmatmul.bf16.gmra.mxu0 %v1486
        %v2000 = vpop.f32.mrf.mxu0
        %v2001 = vadd.f32 %v816, %v2000
        %v2002 = vpop.f32.mrf.mxu0
        %v2003 = vadd.f32 %v816, %v2002
        %2004 = vdwg.mxu0
        %2005 = vmatpush.bf16.xpose.msra.mxu0 %v1678
        %2006 = vmatpush.bf16.xpose.msra.mxu0 %v1675
        %2007 = vmatpush.bf16.xpose.msra.mxu0 %v1672
        %2008 = vmatpush.bf16.xpose.msra.mxu0 %v1669
        %2009 = vmatpush.bf16.xpose.msra.mxu0 %v1666
        %2010 = vmatpush.bf16.xpose.msra.mxu0 %v1663
        %2011 = vmatpush.bf16.xpose.msra.mxu0 %v1660
        %2012 = vmatpush.bf16.xpose.msra.mxu0 %v1657
        %2013 = vmatmul.bf16.gmra.mxu0 %v1483
        %v2014 = vpop.f32.mrf.mxu0
        %v2015 = vadd.f32 %v817, %v2014
        %v2016 = vpop.f32.mrf.mxu0
        %v2017 = vadd.f32 %v817, %v2016
        %2018 = vmatmul.bf16.gmra.mxu0 %v1486
        %v2019 = vpop.f32.mrf.mxu0
        %v2020 = vadd.f32 %v817, %v2019
        %v2021 = vpop.f32.mrf.mxu0
        %v2022 = vadd.f32 %v817, %v2021
        %2023 = vdwg.mxu0
        %2024 = vmatpush.bf16.xpose.msra.mxu0 %v1702
        %2025 = vmatpush.bf16.xpose.msra.mxu0 %v1699
        %2026 = vmatpush.bf16.xpose.msra.mxu0 %v1696
        %2027 = vmatpush.bf16.xpose.msra.mxu0 %v1693
        %2028 = vmatpush.bf16.xpose.msra.mxu0 %v1690
        %2029 = vmatpush.bf16.xpose.msra.mxu0 %v1687
        %2030 = vmatpush.bf16.xpose.msra.mxu0 %v1684
        %2031 = vmatpush.bf16.xpose.msra.mxu0 %v1681
        %2032 = vmatmul.bf16.gmra.mxu0 %v1483
        %v2033 = vpop.f32.mrf.mxu0
        %v2034 = vadd.f32 %v818, %v2033
        %v2035 = vpop.f32.mrf.mxu0
        %v2036 = vadd.f32 %v818, %v2035
        %2037 = vmatmul.bf16.gmra.mxu0 %v1486
        %v2038 = vpop.f32.mrf.mxu0
        %v2039 = vadd.f32 %v818, %v2038
        %v2040 = vpop.f32.mrf.mxu0
        %v2041 = vadd.f32 %v818, %v2040
        %2042 = vdwg.mxu0
        %2043 = vmatpush.bf16.xpose.msra.mxu0 %v1726
        %2044 = vmatpush.bf16.xpose.msra.mxu0 %v1723
        %2045 = vmatpush.bf16.xpose.msra.mxu0 %v1720
        %2046 = vmatpush.bf16.xpose.msra.mxu0 %v1717
        %2047 = vmatpush.bf16.xpose.msra.mxu0 %v1714
        %2048 = vmatpush.bf16.xpose.msra.mxu0 %v1711
        %2049 = vmatpush.bf16.xpose.msra.mxu0 %v1708
        %2050 = vmatpush.bf16.xpose.msra.mxu0 %v1705
        %2051 = vmatmul.bf16.gmra.mxu0 %v1483
        %v2052 = vpop.f32.mrf.mxu0
        %v2053 = vadd.f32 %v819, %v2052
        %v2054 = vpop.f32.mrf.mxu0
        %v2055 = vadd.f32 %v819, %v2054
        %2056 = vmatmul.bf16.gmra.mxu0 %v1486
        %v2057 = vpop.f32.mrf.mxu0
        %v2058 = vadd.f32 %v819, %v2057
        %v2059 = vpop.f32.mrf.mxu0
        %v2060 = vadd.f32 %v819, %v2059
        %2061 = vdwg.mxu0
        %2062 = vmatpush.bf16.xpose.msra.mxu0 %v1750
        %2063 = vmatpush.bf16.xpose.msra.mxu0 %v1747
        %2064 = vmatpush.bf16.xpose.msra.mxu0 %v1744
        %2065 = vmatpush.bf16.xpose.msra.mxu0 %v1741
        %2066 = vmatpush.bf16.xpose.msra.mxu0 %v1738
        %2067 = vmatpush.bf16.xpose.msra.mxu0 %v1735
        %2068 = vmatpush.bf16.xpose.msra.mxu0 %v1732
        %2069 = vmatpush.bf16.xpose.msra.mxu0 %v1729
        %2070 = vmatmul.bf16.gmra.mxu0 %v1483
        %v2071 = vpop.f32.mrf.mxu0
        %v2072 = vadd.f32 %v820, %v2071
        %v2073 = vpop.f32.mrf.mxu0
        %v2074 = vadd.f32 %v820, %v2073
        %2075 = vmatmul.bf16.gmra.mxu0 %v1486
        %v2076 = vpop.f32.mrf.mxu0
        %v2077 = vadd.f32 %v820, %v2076
        %v2078 = vpop.f32.mrf.mxu0
        %v2079 = vadd.f32 %v820, %v2078
        %2080 = vdwg.mxu0
        %2081 = vmatpush.bf16.xpose.msra.mxu0 %v1774
        %2082 = vmatpush.bf16.xpose.msra.mxu0 %v1771
        %2083 = vmatpush.bf16.xpose.msra.mxu0 %v1768
        %2084 = vmatpush.bf16.xpose.msra.mxu0 %v1765
        %2085 = vmatpush.bf16.xpose.msra.mxu0 %v1762
        %2086 = vmatpush.bf16.xpose.msra.mxu0 %v1759
        %2087 = vmatpush.bf16.xpose.msra.mxu0 %v1756
        %2088 = vmatpush.bf16.xpose.msra.mxu0 %v1753
        %2089 = vmatmul.bf16.gmra.mxu0 %v1483
        %v2090 = vpop.f32.mrf.mxu0
        %v2091 = vadd.f32 %v821, %v2090
        %v2092 = vpop.f32.mrf.mxu0
        %v2093 = vadd.f32 %v821, %v2092
        %2094 = vmatmul.bf16.gmra.mxu0 %v1486
        %v2095 = vpop.f32.mrf.mxu0
        %v2096 = vadd.f32 %v821, %v2095
        %v2097 = vpop.f32.mrf.mxu0
        %v2098 = vadd.f32 %v821, %v2097
        %2099 = vdwg.mxu0
        %2100 = vmatpush.bf16.xpose.msra.mxu0 %v1798
        %2101 = vmatpush.bf16.xpose.msra.mxu0 %v1795
        %2102 = vmatpush.bf16.xpose.msra.mxu0 %v1792
        %2103 = vmatpush.bf16.xpose.msra.mxu0 %v1789
        %2104 = vmatpush.bf16.xpose.msra.mxu0 %v1786
        %2105 = vmatpush.bf16.xpose.msra.mxu0 %v1783
        %2106 = vmatpush.bf16.xpose.msra.mxu0 %v1780
        %2107 = vmatpush.bf16.xpose.msra.mxu0 %v1777
        %2108 = vmatmul.bf16.gmra.mxu0 %v1483
        %v2109 = vpop.f32.mrf.mxu0
        %v2110 = vadd.f32 %v822, %v2109
        %v2111 = vpop.f32.mrf.mxu0
        %v2112 = vadd.f32 %v822, %v2111
        %2113 = vmatmul.bf16.gmra.mxu0 %v1486
        %v2114 = vpop.f32.mrf.mxu0
        %v2115 = vadd.f32 %v822, %v2114
        %v2116 = vpop.f32.mrf.mxu0
        %v2117 = vadd.f32 %v822, %v2116
        %2118 = vdwg.mxu0
        %2119 = vmatpush.bf16.xpose.msra.mxu0 %v1822
        %2120 = vmatpush.bf16.xpose.msra.mxu0 %v1819
        %2121 = vmatpush.bf16.xpose.msra.mxu0 %v1816
        %2122 = vmatpush.bf16.xpose.msra.mxu0 %v1813
        %2123 = vmatpush.bf16.xpose.msra.mxu0 %v1810
        %2124 = vmatpush.bf16.xpose.msra.mxu0 %v1807
        %2125 = vmatpush.bf16.xpose.msra.mxu0 %v1804
        %2126 = vmatpush.bf16.xpose.msra.mxu0 %v1801
        %2127 = vmatmul.bf16.gmra.mxu0 %v1483
        %v2128 = vpop.f32.mrf.mxu0
        %v2129 = vadd.f32 %v823, %v2128
        %v2130 = vpop.f32.mrf.mxu0
        %v2131 = vadd.f32 %v823, %v2130
        %2132 = vmatmul.bf16.gmra.mxu0 %v1486
        %v2133 = vpop.f32.mrf.mxu0
        %v2134 = vadd.f32 %v823, %v2133
        %v2135 = vpop.f32.mrf.mxu0
        %v2136 = vadd.f32 %v823, %v2135
        %2137 = vdwg.mxu0
        %2138 = vmatpush.bf16.xpose.msra.mxu0 %v1846
        %2139 = vmatpush.bf16.xpose.msra.mxu0 %v1843
        %2140 = vmatpush.bf16.xpose.msra.mxu0 %v1840
        %2141 = vmatpush.bf16.xpose.msra.mxu0 %v1837
        %2142 = vmatpush.bf16.xpose.msra.mxu0 %v1834
        %2143 = vmatpush.bf16.xpose.msra.mxu0 %v1831
        %2144 = vmatpush.bf16.xpose.msra.mxu0 %v1828
        %2145 = vmatpush.bf16.xpose.msra.mxu0 %v1825
        %2146 = vmatmul.bf16.gmra.mxu0 %v1483
        %v2147 = vpop.f32.mrf.mxu0
        %v2148 = vadd.f32 %v824, %v2147
        %v2149 = vpop.f32.mrf.mxu0
        %v2150 = vadd.f32 %v824, %v2149
        %2151 = vmatmul.bf16.gmra.mxu0 %v1486
        %v2152 = vpop.f32.mrf.mxu0
        %v2153 = vadd.f32 %v824, %v2152
        %v2154 = vpop.f32.mrf.mxu0
        %v2155 = vadd.f32 %v824, %v2154
        %2156 = vdwg.mxu0
        %2157 = vmatpush.bf16.xpose.msra.mxu0 %v1870
        %2158 = vmatpush.bf16.xpose.msra.mxu0 %v1867
        %2159 = vmatpush.bf16.xpose.msra.mxu0 %v1864
        %2160 = vmatpush.bf16.xpose.msra.mxu0 %v1861
        %2161 = vmatpush.bf16.xpose.msra.mxu0 %v1858
        %2162 = vmatpush.bf16.xpose.msra.mxu0 %v1855
        %2163 = vmatpush.bf16.xpose.msra.mxu0 %v1852
        %2164 = vmatpush.bf16.xpose.msra.mxu0 %v1849
        %2165 = vmatmul.bf16.gmra.mxu0 %v1483
        %v2166 = vpop.f32.mrf.mxu0
        %v2167 = vadd.f32 %v825, %v2166
        %v2168 = vpop.f32.mrf.mxu0
        %v2169 = vadd.f32 %v825, %v2168
        %2170 = vmatmul.bf16.gmra.mxu0 %v1486
        %v2171 = vpop.f32.mrf.mxu0
        %v2172 = vadd.f32 %v825, %v2171
        %v2173 = vpop.f32.mrf.mxu0
        %v2174 = vadd.f32 %v825, %v2173
        %2175 = vdwg.mxu0
        %v2176 = vmax.f32 %v1882, 0.0
        %v2177 = vmax.f32 %v1901, 0.0
        %v2178 = vmax.f32 %v1920, 0.0
        %v2179 = vmax.f32 %v1939, 0.0
        %v2180 = vmax.f32 %v1958, 0.0
        %v2181 = vmax.f32 %v1977, 0.0
        %v2182 = vmax.f32 %v1996, 0.0
        %v2183 = vmax.f32 %v2015, 0.0
        %v2184 = vmax.f32 %v2034, 0.0
        %v2185 = vmax.f32 %v2053, 0.0
        %v2186 = vmax.f32 %v2072, 0.0
        %v2187 = vmax.f32 %v2091, 0.0
        %v2188 = vmax.f32 %v2110, 0.0
        %v2189 = vmax.f32 %v2129, 0.0
        %v2190 = vmax.f32 %v2148, 0.0
        %v2191 = vmax.f32 %v2167, 0.0
        %v2192 = vmax.f32 %v1884, 0.0
        %v2193 = vmax.f32 %v1903, 0.0
        %v2194 = vmax.f32 %v1922, 0.0
        %v2195 = vmax.f32 %v1941, 0.0
        %v2196 = vmax.f32 %v1960, 0.0
        %v2197 = vmax.f32 %v1979, 0.0
        %v2198 = vmax.f32 %v1998, 0.0
        %v2199 = vmax.f32 %v2017, 0.0
        %v2200 = vmax.f32 %v2036, 0.0
        %v2201 = vmax.f32 %v2055, 0.0
        %v2202 = vmax.f32 %v2074, 0.0
        %v2203 = vmax.f32 %v2093, 0.0
        %v2204 = vmax.f32 %v2112, 0.0
        %v2205 = vmax.f32 %v2131, 0.0
        %v2206 = vmax.f32 %v2150, 0.0
        %v2207 = vmax.f32 %v2169, 0.0
        %v2208 = vmax.f32 %v1887, 0.0
        %v2209 = vmax.f32 %v1906, 0.0
        %v2210 = vmax.f32 %v1925, 0.0
        %v2211 = vmax.f32 %v1944, 0.0
        %v2212 = vmax.f32 %v1963, 0.0
        %v2213 = vmax.f32 %v1982, 0.0
        %v2214 = vmax.f32 %v2001, 0.0
        %v2215 = vmax.f32 %v2020, 0.0
        %v2216 = vmax.f32 %v2039, 0.0
        %v2217 = vmax.f32 %v2058, 0.0
        %v2218 = vmax.f32 %v2077, 0.0
        %v2219 = vmax.f32 %v2096, 0.0
        %v2220 = vmax.f32 %v2115, 0.0
        %v2221 = vmax.f32 %v2134, 0.0
        %v2222 = vmax.f32 %v2153, 0.0
        %v2223 = vmax.f32 %v2172, 0.0
        %v2224 = vmax.f32 %v1889, 0.0
        %v2225 = vmax.f32 %v1908, 0.0
        %v2226 = vmax.f32 %v1927, 0.0
        %v2227 = vmax.f32 %v1946, 0.0
        %v2228 = vmax.f32 %v1965, 0.0
        %v2229 = vmax.f32 %v1984, 0.0
        %v2230 = vmax.f32 %v2003, 0.0
        %v2231 = vmax.f32 %v2022, 0.0
        %v2232 = vmax.f32 %v2041, 0.0
        %v2233 = vmax.f32 %v2060, 0.0
        %v2234 = vmax.f32 %v2079, 0.0
        %v2235 = vmax.f32 %v2098, 0.0
        %v2236 = vmax.f32 %v2117, 0.0
        %v2237 = vmax.f32 %v2136, 0.0
        %v2238 = vmax.f32 %v2155, 0.0
        %v2239 = vmax.f32 %v2174, 0.0
        %v2240 = vpack.c.bf16 %v2192, %v2176
        %v2241 = vpack.c.bf16 %v2193, %v2177
        %v2242 = vpack.c.bf16 %v2194, %v2178
        %v2243 = vpack.c.bf16 %v2195, %v2179
        %v2244 = vpack.c.bf16 %v2196, %v2180
        %v2245 = vpack.c.bf16 %v2197, %v2181
        %v2246 = vpack.c.bf16 %v2198, %v2182
        %v2247 = vpack.c.bf16 %v2199, %v2183
        %v2248 = vpack.c.bf16 %v2200, %v2184
        %v2249 = vpack.c.bf16 %v2201, %v2185
        %v2250 = vpack.c.bf16 %v2202, %v2186
        %v2251 = vpack.c.bf16 %v2203, %v2187
        %v2252 = vpack.c.bf16 %v2204, %v2188
        %v2253 = vpack.c.bf16 %v2205, %v2189
        %v2254 = vpack.c.bf16 %v2206, %v2190
        %v2255 = vpack.c.bf16 %v2207, %v2191
        %v2256 = vpack.c.bf16 %v2224, %v2208
        %v2257 = vpack.c.bf16 %v2225, %v2209
        %v2258 = vpack.c.bf16 %v2226, %v2210
        %v2259 = vpack.c.bf16 %v2227, %v2211
        %v2260 = vpack.c.bf16 %v2228, %v2212
        %v2261 = vpack.c.bf16 %v2229, %v2213
        %v2262 = vpack.c.bf16 %v2230, %v2214
        %v2263 = vpack.c.bf16 %v2231, %v2215
        %v2264 = vpack.c.bf16 %v2232, %v2216
        %v2265 = vpack.c.bf16 %v2233, %v2217
        %v2266 = vpack.c.bf16 %v2234, %v2218
        %v2267 = vpack.c.bf16 %v2235, %v2219
        %v2268 = vpack.c.bf16 %v2236, %v2220
        %v2269 = vpack.c.bf16 %v2237, %v2221
        %v2270 = vpack.c.bf16 %v2238, %v2222
        %v2271 = vpack.c.bf16 %v2239, %v2223
        %v2272 = vld [vmem:[%s4] sm:$0xff]
        %v2273 = vld [vmem:[%s4 + $0x8] sm:$0xff]
        %v2274 = vld [vmem:[%s4 + $0x10] sm:$0xff]
        %v2275 = vld [vmem:[%s4 + $0x18] sm:$0xff]
        %v2276 = vld [vmem:[%s4 + $0x20] sm:$0xff]
        %v2277 = vld [vmem:[%s4 + $0x28] sm:$0xff]
        %v2278 = vld [vmem:[%s4 + $0x30] sm:$0xff]
        %v2279 = vld [vmem:[%s4 + $0x38] sm:$0xff]
        %v2280 = vld [vmem:[%s4 + $0x40] sm:$0xff]
        %v2281 = vld [vmem:[%s4 + $0x48] sm:$0xff]
        %v2282 = vld [vmem:[%s4 + $0x50] sm:$0xff]
        %v2283 = vld [vmem:[%s4 + $0x58] sm:$0xff]
        %v2284 = vld [vmem:[%s4 + $0x60] sm:$0xff]
        %v2285 = vld [vmem:[%s4 + $0x68] sm:$0xff]
        %v2286 = vld [vmem:[%s4 + $0x70] sm:$0xff]
        %v2287 = vld [vmem:[%s4 + $0x78] sm:$0xff]
        %v2288 = vld [vmem:[%s4 + $0x80] sm:$0xff]
        %v2289 = vld [vmem:[%s4 + $0x88] sm:$0xff]
        %v2290 = vld [vmem:[%s4 + $0x90] sm:$0xff]
        %v2291 = vld [vmem:[%s4 + $0x98] sm:$0xff]
        %v2292 = vld [vmem:[%s4 + $0xa0] sm:$0xff]
        %v2293 = vld [vmem:[%s4 + $0xa8] sm:$0xff]
        %v2294 = vld [vmem:[%s4 + $0xb0] sm:$0xff]
        %v2295 = vld [vmem:[%s4 + $0xb8] sm:$0xff]
        %v2296 = vld [vmem:[%s4 + $0xc0] sm:$0xff]
        %v2297 = vld [vmem:[%s4 + $0xc8] sm:$0xff]
        %v2298 = vld [vmem:[%s4 + $0xd0] sm:$0xff]
        %v2299 = vld [vmem:[%s4 + $0xd8] sm:$0xff]
        %v2300 = vld [vmem:[%s4 + $0xe0] sm:$0xff]
        %v2301 = vld [vmem:[%s4 + $0xe8] sm:$0xff]
        %v2302 = vld [vmem:[%s4 + $0xf0] sm:$0xff]
        %v2303 = vld [vmem:[%s4 + $0xf8] sm:$0xff]
        %v2304 = vld [vmem:[%s5] sm:$0x1]
        %v2306 = vperm.slane %v2304, 0
        %v2340 = vunpack.c.l.b16 %v2272
        %v2341 = vunpack.c.h.b16 %v2272
        %v2342 = vunpack.c.l.b16 %v2273
        %v2343 = vunpack.c.h.b16 %v2273
        %v2344 = vunpack.c.l.b16 %v2274
        %v2345 = vunpack.c.h.b16 %v2274
        %v2346 = vunpack.c.l.b16 %v2275
        %v2347 = vunpack.c.h.b16 %v2275
        %v2348 = vunpack.c.l.b16 %v2276
        %v2349 = vunpack.c.h.b16 %v2276
        %v2350 = vunpack.c.l.b16 %v2277
        %v2351 = vunpack.c.h.b16 %v2277
        %v2352 = vunpack.c.l.b16 %v2278
        %v2353 = vunpack.c.h.b16 %v2278
        %v2354 = vunpack.c.l.b16 %v2279
        %v2355 = vunpack.c.h.b16 %v2279
        %v2356 = vunpack.c.l.b16 %v2280
        %v2357 = vunpack.c.h.b16 %v2280
        %v2358 = vunpack.c.l.b16 %v2281
        %v2359 = vunpack.c.h.b16 %v2281
        %v2360 = vunpack.c.l.b16 %v2282
        %v2361 = vunpack.c.h.b16 %v2282
        %v2362 = vunpack.c.l.b16 %v2283
        %v2363 = vunpack.c.h.b16 %v2283
        %v2364 = vunpack.c.l.b16 %v2284
        %v2365 = vunpack.c.h.b16 %v2284
        %v2366 = vunpack.c.l.b16 %v2285
        %v2367 = vunpack.c.h.b16 %v2285
        %v2368 = vunpack.c.l.b16 %v2286
        %v2369 = vunpack.c.h.b16 %v2286
        %v2370 = vunpack.c.l.b16 %v2287
        %v2371 = vunpack.c.h.b16 %v2287
        %v2372 = vunpack.c.l.b16 %v2288
        %v2373 = vunpack.c.h.b16 %v2288
        %v2374 = vunpack.c.l.b16 %v2289
        %v2375 = vunpack.c.h.b16 %v2289
        %v2376 = vunpack.c.l.b16 %v2290
        %v2377 = vunpack.c.h.b16 %v2290
        %v2378 = vunpack.c.l.b16 %v2291
        %v2379 = vunpack.c.h.b16 %v2291
        %v2380 = vunpack.c.l.b16 %v2292
        %v2381 = vunpack.c.h.b16 %v2292
        %v2382 = vunpack.c.l.b16 %v2293
        %v2383 = vunpack.c.h.b16 %v2293
        %v2384 = vunpack.c.l.b16 %v2294
        %v2385 = vunpack.c.h.b16 %v2294
        %v2386 = vunpack.c.l.b16 %v2295
        %v2387 = vunpack.c.h.b16 %v2295
        %v2388 = vunpack.c.l.b16 %v2296
        %v2389 = vunpack.c.h.b16 %v2296
        %v2390 = vunpack.c.l.b16 %v2297
        %v2391 = vunpack.c.h.b16 %v2297
        %v2392 = vunpack.c.l.b16 %v2298
        %v2393 = vunpack.c.h.b16 %v2298
        %v2394 = vunpack.c.l.b16 %v2299
        %v2395 = vunpack.c.h.b16 %v2299
        %v2396 = vunpack.c.l.b16 %v2300
        %v2397 = vunpack.c.h.b16 %v2300
        %v2398 = vunpack.c.l.b16 %v2301
        %v2399 = vunpack.c.h.b16 %v2301
        %v2400 = vunpack.c.l.b16 %v2302
        %v2401 = vunpack.c.h.b16 %v2302
        %v2402 = vunpack.c.l.b16 %v2303
        %v2403 = vunpack.c.h.b16 %v2303
        %v2404 = vpack.c.b16 %v2356, %v2340
        %v2405 = vpack.c.b16 %v2357, %v2341
        %v2406 = vpack.c.b16 %v2358, %v2342
        %v2407 = vpack.c.b16 %v2359, %v2343
        %v2408 = vpack.c.b16 %v2360, %v2344
        %v2409 = vpack.c.b16 %v2361, %v2345
        %v2410 = vpack.c.b16 %v2362, %v2346
        %v2411 = vpack.c.b16 %v2363, %v2347
        %v2412 = vpack.c.b16 %v2364, %v2348
        %v2413 = vpack.c.b16 %v2365, %v2349
        %v2414 = vpack.c.b16 %v2366, %v2350
        %v2415 = vpack.c.b16 %v2367, %v2351
        %v2416 = vpack.c.b16 %v2368, %v2352
        %v2417 = vpack.c.b16 %v2369, %v2353
        %v2418 = vpack.c.b16 %v2370, %v2354
        %v2419 = vpack.c.b16 %v2371, %v2355
        %v2420 = vpack.c.b16 %v2388, %v2372
        %v2421 = vpack.c.b16 %v2389, %v2373
        %v2422 = vpack.c.b16 %v2390, %v2374
        %v2423 = vpack.c.b16 %v2391, %v2375
        %v2424 = vpack.c.b16 %v2392, %v2376
        %v2425 = vpack.c.b16 %v2393, %v2377
        %v2426 = vpack.c.b16 %v2394, %v2378
        %v2427 = vpack.c.b16 %v2395, %v2379
        %v2428 = vpack.c.b16 %v2396, %v2380
        %v2429 = vpack.c.b16 %v2397, %v2381
        %v2430 = vpack.c.b16 %v2398, %v2382
        %v2431 = vpack.c.b16 %v2399, %v2383
        %v2432 = vpack.c.b16 %v2400, %v2384
        %v2433 = vpack.c.b16 %v2401, %v2385
        %v2434 = vpack.c.b16 %v2402, %v2386
        %v2435 = vpack.c.b16 %v2403, %v2387
        %2468 = vmatpush.bf16.xpose.msra.mxu0 0
        %2469 = vmatpush.bf16.xpose.msra.mxu0 0
        %2470 = vmatpush.bf16.xpose.msra.mxu0 0
        %2471 = vmatpush.bf16.xpose.msra.mxu0 0
        %2472 = vmatpush.bf16.xpose.msra.mxu0 0
        %2473 = vmatpush.bf16.xpose.msra.mxu0 0
        %2474 = vmatpush.bf16.xpose.msra.mxu0 %v2420
        %2475 = vmatpush.bf16.xpose.msra.mxu0 %v2404
        %2476 = vmatmul.bf16.gmra.mxu0 %v2240
        %v2477 = vpop.f32.mrf.mxu0
        %v2478 = vadd.f32 %v2306, %v2477
        %v2479 = vpop.f32.mrf.mxu0
        %v2480 = vadd.f32 %v2306, %v2479
        %2481 = vmatmul.bf16.gmra.mxu0 %v2256
        %v2482 = vpop.f32.mrf.mxu0
        %v2483 = vadd.f32 %v2306, %v2482
        %v2484 = vpop.f32.mrf.mxu0
        %v2485 = vadd.f32 %v2306, %v2484
        %2486 = vdwg.mxu0
        %2487 = vmatpush.bf16.xpose.msra.mxu0 0
        %2488 = vmatpush.bf16.xpose.msra.mxu0 0
        %2489 = vmatpush.bf16.xpose.msra.mxu0 0
        %2490 = vmatpush.bf16.xpose.msra.mxu0 0
        %2491 = vmatpush.bf16.xpose.msra.mxu0 0
        %2492 = vmatpush.bf16.xpose.msra.mxu0 0
        %2493 = vmatpush.bf16.xpose.msra.mxu0 %v2421
        %2494 = vmatpush.bf16.xpose.msra.mxu0 %v2405
        %2495 = vmatmul.bf16.gmra.mxu0 %v2241
        %v2496 = vpop.f32.mrf.mxu0
        %v2497 = vadd.f32 %v2478, %v2496
        %v2498 = vpop.f32.mrf.mxu0
        %v2499 = vadd.f32 %v2480, %v2498
        %2500 = vmatmul.bf16.gmra.mxu0 %v2257
        %v2501 = vpop.f32.mrf.mxu0
        %v2502 = vadd.f32 %v2483, %v2501
        %v2503 = vpop.f32.mrf.mxu0
        %v2504 = vadd.f32 %v2485, %v2503
        %2505 = vdwg.mxu0
        %2506 = vmatpush.bf16.xpose.msra.mxu0 0
        %2507 = vmatpush.bf16.xpose.msra.mxu0 0
        %2508 = vmatpush.bf16.xpose.msra.mxu0 0
        %2509 = vmatpush.bf16.xpose.msra.mxu0 0
        %2510 = vmatpush.bf16.xpose.msra.mxu0 0
        %2511 = vmatpush.bf16.xpose.msra.mxu0 0
        %2512 = vmatpush.bf16.xpose.msra.mxu0 %v2422
        %2513 = vmatpush.bf16.xpose.msra.mxu0 %v2406
        %2514 = vmatmul.bf16.gmra.mxu0 %v2242
        %v2515 = vpop.f32.mrf.mxu0
        %v2516 = vadd.f32 %v2497, %v2515
        %v2517 = vpop.f32.mrf.mxu0
        %v2518 = vadd.f32 %v2499, %v2517
        %2519 = vmatmul.bf16.gmra.mxu0 %v2258
        %v2520 = vpop.f32.mrf.mxu0
        %v2521 = vadd.f32 %v2502, %v2520
        %v2522 = vpop.f32.mrf.mxu0
        %v2523 = vadd.f32 %v2504, %v2522
        %2524 = vdwg.mxu0
        %2525 = vmatpush.bf16.xpose.msra.mxu0 0
        %2526 = vmatpush.bf16.xpose.msra.mxu0 0
        %2527 = vmatpush.bf16.xpose.msra.mxu0 0
        %2528 = vmatpush.bf16.xpose.msra.mxu0 0
        %2529 = vmatpush.bf16.xpose.msra.mxu0 0
        %2530 = vmatpush.bf16.xpose.msra.mxu0 0
        %2531 = vmatpush.bf16.xpose.msra.mxu0 %v2423
        %2532 = vmatpush.bf16.xpose.msra.mxu0 %v2407
        %2533 = vmatmul.bf16.gmra.mxu0 %v2243
        %v2534 = vpop.f32.mrf.mxu0
        %v2535 = vadd.f32 %v2516, %v2534
        %v2536 = vpop.f32.mrf.mxu0
        %v2537 = vadd.f32 %v2518, %v2536
        %2538 = vmatmul.bf16.gmra.mxu0 %v2259
        %v2539 = vpop.f32.mrf.mxu0
        %v2540 = vadd.f32 %v2521, %v2539
        %v2541 = vpop.f32.mrf.mxu0
        %v2542 = vadd.f32 %v2523, %v2541
        %2543 = vdwg.mxu0
        %2544 = vmatpush.bf16.xpose.msra.mxu0 0
        %2545 = vmatpush.bf16.xpose.msra.mxu0 0
        %2546 = vmatpush.bf16.xpose.msra.mxu0 0
        %2547 = vmatpush.bf16.xpose.msra.mxu0 0
        %2548 = vmatpush.bf16.xpose.msra.mxu0 0
        %2549 = vmatpush.bf16.xpose.msra.mxu0 0
        %2550 = vmatpush.bf16.xpose.msra.mxu0 %v2424
        %2551 = vmatpush.bf16.xpose.msra.mxu0 %v2408
        %2552 = vmatmul.bf16.gmra.mxu0 %v2244
        %v2553 = vpop.f32.mrf.mxu0
        %v2554 = vadd.f32 %v2535, %v2553
        %v2555 = vpop.f32.mrf.mxu0
        %v2556 = vadd.f32 %v2537, %v2555
        %2557 = vmatmul.bf16.gmra.mxu0 %v2260
        %v2558 = vpop.f32.mrf.mxu0
        %v2559 = vadd.f32 %v2540, %v2558
        %v2560 = vpop.f32.mrf.mxu0
        %v2561 = vadd.f32 %v2542, %v2560
        %2562 = vdwg.mxu0
        %2563 = vmatpush.bf16.xpose.msra.mxu0 0
        %2564 = vmatpush.bf16.xpose.msra.mxu0 0
        %2565 = vmatpush.bf16.xpose.msra.mxu0 0
        %2566 = vmatpush.bf16.xpose.msra.mxu0 0
        %2567 = vmatpush.bf16.xpose.msra.mxu0 0
        %2568 = vmatpush.bf16.xpose.msra.mxu0 0
        %2569 = vmatpush.bf16.xpose.msra.mxu0 %v2425
        %2570 = vmatpush.bf16.xpose.msra.mxu0 %v2409
        %2571 = vmatmul.bf16.gmra.mxu0 %v2245
        %v2572 = vpop.f32.mrf.mxu0
        %v2573 = vadd.f32 %v2554, %v2572
        %v2574 = vpop.f32.mrf.mxu0
        %v2575 = vadd.f32 %v2556, %v2574
        %2576 = vmatmul.bf16.gmra.mxu0 %v2261
        %v2577 = vpop.f32.mrf.mxu0
        %v2578 = vadd.f32 %v2559, %v2577
        %v2579 = vpop.f32.mrf.mxu0
        %v2580 = vadd.f32 %v2561, %v2579
        %2581 = vdwg.mxu0
        %2582 = vmatpush.bf16.xpose.msra.mxu0 0
        %2583 = vmatpush.bf16.xpose.msra.mxu0 0
        %2584 = vmatpush.bf16.xpose.msra.mxu0 0
        %2585 = vmatpush.bf16.xpose.msra.mxu0 0
        %2586 = vmatpush.bf16.xpose.msra.mxu0 0
        %2587 = vmatpush.bf16.xpose.msra.mxu0 0
        %2588 = vmatpush.bf16.xpose.msra.mxu0 %v2426
        %2589 = vmatpush.bf16.xpose.msra.mxu0 %v2410
        %2590 = vmatmul.bf16.gmra.mxu0 %v2246
        %v2591 = vpop.f32.mrf.mxu0
        %v2592 = vadd.f32 %v2573, %v2591
        %v2593 = vpop.f32.mrf.mxu0
        %v2594 = vadd.f32 %v2575, %v2593
        %2595 = vmatmul.bf16.gmra.mxu0 %v2262
        %v2596 = vpop.f32.mrf.mxu0
        %v2597 = vadd.f32 %v2578, %v2596
        %v2598 = vpop.f32.mrf.mxu0
        %v2599 = vadd.f32 %v2580, %v2598
        %2600 = vdwg.mxu0
        %2601 = vmatpush.bf16.xpose.msra.mxu0 0
        %2602 = vmatpush.bf16.xpose.msra.mxu0 0
        %2603 = vmatpush.bf16.xpose.msra.mxu0 0
        %2604 = vmatpush.bf16.xpose.msra.mxu0 0
        %2605 = vmatpush.bf16.xpose.msra.mxu0 0
        %2606 = vmatpush.bf16.xpose.msra.mxu0 0
        %2607 = vmatpush.bf16.xpose.msra.mxu0 %v2427
        %2608 = vmatpush.bf16.xpose.msra.mxu0 %v2411
        %2609 = vmatmul.bf16.gmra.mxu0 %v2247
        %v2610 = vpop.f32.mrf.mxu0
        %v2611 = vadd.f32 %v2592, %v2610
        %v2612 = vpop.f32.mrf.mxu0
        %v2613 = vadd.f32 %v2594, %v2612
        %2614 = vmatmul.bf16.gmra.mxu0 %v2263
        %v2615 = vpop.f32.mrf.mxu0
        %v2616 = vadd.f32 %v2597, %v2615
        %v2617 = vpop.f32.mrf.mxu0
        %v2618 = vadd.f32 %v2599, %v2617
        %2619 = vdwg.mxu0
        %2620 = vmatpush.bf16.xpose.msra.mxu0 0
        %2621 = vmatpush.bf16.xpose.msra.mxu0 0
        %2622 = vmatpush.bf16.xpose.msra.mxu0 0
        %2623 = vmatpush.bf16.xpose.msra.mxu0 0
        %2624 = vmatpush.bf16.xpose.msra.mxu0 0
        %2625 = vmatpush.bf16.xpose.msra.mxu0 0
        %2626 = vmatpush.bf16.xpose.msra.mxu0 %v2428
        %2627 = vmatpush.bf16.xpose.msra.mxu0 %v2412
        %2628 = vmatmul.bf16.gmra.mxu0 %v2248
        %v2629 = vpop.f32.mrf.mxu0
        %v2630 = vadd.f32 %v2611, %v2629
        %v2631 = vpop.f32.mrf.mxu0
        %v2632 = vadd.f32 %v2613, %v2631
        %2633 = vmatmul.bf16.gmra.mxu0 %v2264
        %v2634 = vpop.f32.mrf.mxu0
        %v2635 = vadd.f32 %v2616, %v2634
        %v2636 = vpop.f32.mrf.mxu0
        %v2637 = vadd.f32 %v2618, %v2636
        %2638 = vdwg.mxu0
        %2639 = vmatpush.bf16.xpose.msra.mxu0 0
        %2640 = vmatpush.bf16.xpose.msra.mxu0 0
        %2641 = vmatpush.bf16.xpose.msra.mxu0 0
        %2642 = vmatpush.bf16.xpose.msra.mxu0 0
        %2643 = vmatpush.bf16.xpose.msra.mxu0 0
        %2644 = vmatpush.bf16.xpose.msra.mxu0 0
        %2645 = vmatpush.bf16.xpose.msra.mxu0 %v2429
        %2646 = vmatpush.bf16.xpose.msra.mxu0 %v2413
        %2647 = vmatmul.bf16.gmra.mxu0 %v2249
        %v2648 = vpop.f32.mrf.mxu0
        %v2649 = vadd.f32 %v2630, %v2648
        %v2650 = vpop.f32.mrf.mxu0
        %v2651 = vadd.f32 %v2632, %v2650
        %2652 = vmatmul.bf16.gmra.mxu0 %v2265
        %v2653 = vpop.f32.mrf.mxu0
        %v2654 = vadd.f32 %v2635, %v2653
        %v2655 = vpop.f32.mrf.mxu0
        %v2656 = vadd.f32 %v2637, %v2655
        %2657 = vdwg.mxu0
        %2658 = vmatpush.bf16.xpose.msra.mxu0 0
        %2659 = vmatpush.bf16.xpose.msra.mxu0 0
        %2660 = vmatpush.bf16.xpose.msra.mxu0 0
        %2661 = vmatpush.bf16.xpose.msra.mxu0 0
        %2662 = vmatpush.bf16.xpose.msra.mxu0 0
        %2663 = vmatpush.bf16.xpose.msra.mxu0 0
        %2664 = vmatpush.bf16.xpose.msra.mxu0 %v2430
        %2665 = vmatpush.bf16.xpose.msra.mxu0 %v2414
        %2666 = vmatmul.bf16.gmra.mxu0 %v2250
        %v2667 = vpop.f32.mrf.mxu0
        %v2668 = vadd.f32 %v2649, %v2667
        %v2669 = vpop.f32.mrf.mxu0
        %v2670 = vadd.f32 %v2651, %v2669
        %2671 = vmatmul.bf16.gmra.mxu0 %v2266
        %v2672 = vpop.f32.mrf.mxu0
        %v2673 = vadd.f32 %v2654, %v2672
        %v2674 = vpop.f32.mrf.mxu0
        %v2675 = vadd.f32 %v2656, %v2674
        %2676 = vdwg.mxu0
        %2677 = vmatpush.bf16.xpose.msra.mxu0 0
        %2678 = vmatpush.bf16.xpose.msra.mxu0 0
        %2679 = vmatpush.bf16.xpose.msra.mxu0 0
        %2680 = vmatpush.bf16.xpose.msra.mxu0 0
        %2681 = vmatpush.bf16.xpose.msra.mxu0 0
        %2682 = vmatpush.bf16.xpose.msra.mxu0 0
        %2683 = vmatpush.bf16.xpose.msra.mxu0 %v2431
        %2684 = vmatpush.bf16.xpose.msra.mxu0 %v2415
        %2685 = vmatmul.bf16.gmra.mxu0 %v2251
        %v2686 = vpop.f32.mrf.mxu0
        %v2687 = vadd.f32 %v2668, %v2686
        %v2688 = vpop.f32.mrf.mxu0
        %v2689 = vadd.f32 %v2670, %v2688
        %2690 = vmatmul.bf16.gmra.mxu0 %v2267
        %v2691 = vpop.f32.mrf.mxu0
        %v2692 = vadd.f32 %v2673, %v2691
        %v2693 = vpop.f32.mrf.mxu0
        %v2694 = vadd.f32 %v2675, %v2693
        %2695 = vdwg.mxu0
        %2696 = vmatpush.bf16.xpose.msra.mxu0 0
        %2697 = vmatpush.bf16.xpose.msra.mxu0 0
        %2698 = vmatpush.bf16.xpose.msra.mxu0 0
        %2699 = vmatpush.bf16.xpose.msra.mxu0 0
        %2700 = vmatpush.bf16.xpose.msra.mxu0 0
        %2701 = vmatpush.bf16.xpose.msra.mxu0 0
        %2702 = vmatpush.bf16.xpose.msra.mxu0 %v2432
        %2703 = vmatpush.bf16.xpose.msra.mxu0 %v2416
        %2704 = vmatmul.bf16.gmra.mxu0 %v2252
        %v2705 = vpop.f32.mrf.mxu0
        %v2706 = vadd.f32 %v2687, %v2705
        %v2707 = vpop.f32.mrf.mxu0
        %v2708 = vadd.f32 %v2689, %v2707
        %2709 = vmatmul.bf16.gmra.mxu0 %v2268
        %v2710 = vpop.f32.mrf.mxu0
        %v2711 = vadd.f32 %v2692, %v2710
        %v2712 = vpop.f32.mrf.mxu0
        %v2713 = vadd.f32 %v2694, %v2712
        %2714 = vdwg.mxu0
        %2715 = vmatpush.bf16.xpose.msra.mxu0 0
        %2716 = vmatpush.bf16.xpose.msra.mxu0 0
        %2717 = vmatpush.bf16.xpose.msra.mxu0 0
        %2718 = vmatpush.bf16.xpose.msra.mxu0 0
        %2719 = vmatpush.bf16.xpose.msra.mxu0 0
        %2720 = vmatpush.bf16.xpose.msra.mxu0 0
        %2721 = vmatpush.bf16.xpose.msra.mxu0 %v2433
        %2722 = vmatpush.bf16.xpose.msra.mxu0 %v2417
        %2723 = vmatmul.bf16.gmra.mxu0 %v2253
        %v2724 = vpop.f32.mrf.mxu0
        %v2725 = vadd.f32 %v2706, %v2724
        %v2726 = vpop.f32.mrf.mxu0
        %v2727 = vadd.f32 %v2708, %v2726
        %2728 = vmatmul.bf16.gmra.mxu0 %v2269
        %v2729 = vpop.f32.mrf.mxu0
        %v2730 = vadd.f32 %v2711, %v2729
        %v2731 = vpop.f32.mrf.mxu0
        %v2732 = vadd.f32 %v2713, %v2731
        %2733 = vdwg.mxu0
        %2734 = vmatpush.bf16.xpose.msra.mxu0 0
        %2735 = vmatpush.bf16.xpose.msra.mxu0 0
        %2736 = vmatpush.bf16.xpose.msra.mxu0 0
        %2737 = vmatpush.bf16.xpose.msra.mxu0 0
        %2738 = vmatpush.bf16.xpose.msra.mxu0 0
        %2739 = vmatpush.bf16.xpose.msra.mxu0 0
        %2740 = vmatpush.bf16.xpose.msra.mxu0 %v2434
        %2741 = vmatpush.bf16.xpose.msra.mxu0 %v2418
        %2742 = vmatmul.bf16.gmra.mxu0 %v2254
        %v2743 = vpop.f32.mrf.mxu0
        %v2744 = vadd.f32 %v2725, %v2743
        %v2745 = vpop.f32.mrf.mxu0
        %v2746 = vadd.f32 %v2727, %v2745
        %2747 = vmatmul.bf16.gmra.mxu0 %v2270
        %v2748 = vpop.f32.mrf.mxu0
        %v2749 = vadd.f32 %v2730, %v2748
        %v2750 = vpop.f32.mrf.mxu0
        %v2751 = vadd.f32 %v2732, %v2750
        %2752 = vdwg.mxu0
        %2753 = vmatpush.bf16.xpose.msra.mxu0 0
        %2754 = vmatpush.bf16.xpose.msra.mxu0 0
        %2755 = vmatpush.bf16.xpose.msra.mxu0 0
        %2756 = vmatpush.bf16.xpose.msra.mxu0 0
        %2757 = vmatpush.bf16.xpose.msra.mxu0 0
        %2758 = vmatpush.bf16.xpose.msra.mxu0 0
        %2759 = vmatpush.bf16.xpose.msra.mxu0 %v2435
        %2760 = vmatpush.bf16.xpose.msra.mxu0 %v2419
        %2761 = vmatmul.bf16.gmra.mxu0 %v2255
        %v2762 = vpop.f32.mrf.mxu0
        %v2763 = vadd.f32 %v2744, %v2762
        %v2764 = vpop.f32.mrf.mxu0
        %v2765 = vadd.f32 %v2746, %v2764
        %2766 = vmatmul.bf16.gmra.mxu0 %v2271
        %v2767 = vpop.f32.mrf.mxu0
        %v2768 = vadd.f32 %v2749, %v2767
        %v2769 = vpop.f32.mrf.mxu0
        %v2770 = vadd.f32 %v2751, %v2769
        %2771 = vdwg.mxu0
        %v2772 = vadd.f32 %v2763, %v352
        %v2773 = vadd.f32 %v2765, %v526
        %v2774 = vadd.f32 %v2768, %v381
        %v2775 = vadd.f32 %v2770, %v545
        %2776 = vst.msk [vmem:[%s265] sm:$0xff] %vm446, %v2772
        %2777 = vst.msk [vmem:[%s265 + $0x8] sm:$0xff] %vm446, %v2773
        %2778 = vst.msk [vmem:[%s265 + $0x10] sm:$0xff] %vm446, %v2774
        %2779 = vst.msk [vmem:[%s265 + $0x18] sm:$0xff] %vm446, %v2775
        %s2780 = sand.u32 %s164, 1
        %s2781 = scalar_lea.sflag [#allocation3], %s2780
        %s2782 = sand.u32 %s164, 1
        %s2783 = smul.addr %s2782, 32
        %s2784 = scalar_lea.vmem [#allocation2], %s2783
        // Predicated region
        $region45: #{tpu_custom_call.1} parent=43 // pred_check
          %p2785 = pneg %p174
        $region46: #{tpu_custom_call.1} parent=43 // pred_check_branch
          %2787 = sbr.rel (%p2785) target = $region48
        $region47: #{tpu_custom_call.1} parent=43 // pred_region
          %s2788 = smul.u32 2, %s20
          %2790 = vsyncadd %s2781, 0
          %s2791 = smul.addr %s2788, 2
          %s2792 = smul.addr %s2791, 8
          %s2793 = scalar_lea.hbm %s6, %s2792
          %s2794 = sshll.u32 %s2784, 4
          %s2795 = int_to_ptr.vmem [resolvable:$true] %s2794
          %s2796 = sshll.u32 %s2793, 4
          %s2797 = int_to_ptr.hbm [resolvable:$true] %s2796
          %2802 = dma.vmem_to_hbm [thread:$0]  %s2795, 512, %s2797, %s2781, 128, 128, 8
        $region48: #{tpu_custom_call.1} parent=43 // pred_fallthru
          _
      $region44: #{tpu_custom_call.1} parent=5 // pred_fallthru
        _
      %p2803 = scmp.le.s32.totalorder 2, %s15
      // Predicated region
      $region49: #{tpu_custom_call.1} parent=5 // pred_check
        %p2804 = pneg %p2803
      $region50: #{tpu_custom_call.1} parent=5 // pred_check_branch
        %2806 = sbr.rel (%p2804) target = $region52
      $region51: #{tpu_custom_call.1} parent=5 // pred_region
        %s2807 = ssub.s32 %s15, 2
        // Predicated region
        $region53: #{tpu_custom_call.1} parent=51 // pred_check
          %p2808 = pneg %p180
        $region54: #{tpu_custom_call.1} parent=51 // pred_check_branch
          %2810 = sbr.rel (%p2808) target = $region56
        $region55: #{tpu_custom_call.1} parent=51 // pred_region
          %s2811 = sand.u32 %s165, 1
          %s2812 = scalar_lea.sflag [#allocation3], %s2811
          %s2813 = sand.u32 %s165, 1
          %s2814 = smul.addr %s2813, 32
          %s2815 = scalar_lea.vmem [#allocation2], %s2814
          %2817 = dma.done %s2812, 512
        $region56: #{tpu_custom_call.1} parent=51 // pred_fallthru
          _
      $region52: #{tpu_custom_call.1} parent=5 // pred_fallthru
        _
    $region6: #{tpu_custom_call.1} parent=1 // loop_footer
      %s19 = sadd.s32 1, %s15
    $region7: #{tpu_custom_call.1} parent=1 // loop_footer_branch
      %14 = sbr.rel target = $region3
    $region8: #{tpu_custom_call.1} parent=1 // loop_exit
      _
    %2818 = vsyncpa [#allocation3], 1
    %s2819 = scalar_lea.sflag [#allocation3], 1
    %2820 = vsyncpa %s2819, 1

</llo_original>
